<compile_context>
chip_gen: v5e
topology: v5e:2x2
jax: 0.10.0
libtpu: 0.0.40
codegen_flags: <defaults>
</compile_context>

<pallas_src>
import functools

import jax
import jax.numpy as jnp
from jax.experimental import pallas as pl
from jax.experimental.pallas import tpu as pltpu

K = 7      # conv kernel size
PAD = 3    # conv padding


def _spatial_attn_kernel(x_ref, w_ref, b_ref, o_ref,
                         sum_ref, max_ref, pbuf_ref,
                         *, H, W, C, HW, L):
    # x_ref   : (1, Ct, HW)  VMEM block (lane-dense flattened spatial)
    # w_ref   : (98,)        SMEM flattened conv weight [avg-plane, max-plane]
    # b_ref   : (1,)         SMEM conv bias
    # o_ref   : (1, 1, HW)   VMEM output block (lane-dense)
    # sum_ref : (1, HW)      running channel sum
    # max_ref : (1, HW)      running channel max
    # pbuf_ref: (2, L)       flat zero-padded avg/max planes, L = (H+6)*W + 6
    c = pl.program_id(1)
    nc = pl.num_programs(1)

    @pl.when(c == 0)
    def _init():
        sum_ref[...] = jnp.zeros_like(sum_ref)
        max_ref[...] = jnp.full_like(max_ref, -jnp.inf)

    x_blk = x_ref[0]                                             # (Ct, HW)
    sum_ref[...] += jnp.sum(x_blk, axis=0, keepdims=True)
    max_ref[...] = jnp.maximum(max_ref[...],
                               jnp.max(x_blk, axis=0, keepdims=True))

    @pl.when(c == nc - 1)
    def _finalize():
        avg = sum_ref[...] * jnp.float32(1.0 / C)                # (1, HW)
        mx = max_ref[...]                                        # (1, HW)

        # Flat zero-padded planes: element (r, col) of the unpadded plane lives at
        # flat index PAD + (r + PAD) * W + col.  Row padding (3 zero rows top and
        # bottom) is handled by the zero head/tail; column padding is handled by
        # per-kw masks below.  Interior write is one contiguous store per plane.
        pbuf_ref[...] = jnp.zeros_like(pbuf_ref)
        off0 = PAD * W + PAD
        pbuf_ref[0:1, off0:off0 + HW] = avg
        pbuf_ref[1:2, off0:off0 + HW] = mx

        # Hoist the 98 scalar weight reads out of the tap loop.
        w_avg = [w_ref[kh * K + kw] for kh in range(K) for kw in range(K)]
        w_max = [w_ref[K * K + kh * K + kw] for kh in range(K) for kw in range(K)]
        bias = b_ref[0]

        col = jax.lax.broadcasted_iota(jnp.int32, (1, HW), 1) % W
        acc = jnp.full((1, HW), bias, dtype=jnp.float32)
        # For output flat index f = i*W + j, tap (kh, kw) reads pbuf[kh*W + kw + f],
        # which equals plane(i+kh-3, j+kw-3) whenever the column j+kw-3 is valid;
        # invalid rows read the zero pad, invalid columns are masked per kw.
        for kw in range(K):
            part = jnp.zeros((1, HW), jnp.float32)
            for kh in range(K):
                t = kh * K + kw
                off = kh * W + kw
                part = part + w_avg[t] * pbuf_ref[0:1, off:off + HW] \
                            + w_max[t] * pbuf_ref[1:2, off:off + HW]
            valid = (col >= PAD - kw) & (col < W + PAD - kw)
            acc = acc + jnp.where(valid, part, 0.0)

        o_ref[0] = jax.nn.sigmoid(acc)                           # lane-dense store


def _choose_c_tile(C, HW, budget_bytes):
    """Largest channel tile whose double-buffered input block fits the budget."""
    cap = max(1, budget_bytes // (2 * HW * 4))
    if C <= cap:
        return C
    d = (cap // 8) * 8
    while d >= 8:
        if C % d == 0:
            return d          # multiple of 8 -> satisfies (8,128) block constraint
        d -= 8
    # Fallback: no suitable divisor; load all channels at once (always correct).
    return C


def spatial_attention(x, conv_w, conv_b, *, c_block_bytes=4 * 1024 * 1024):
    """x: (N, C, H, W) f32; conv_w: (1, 2, 7, 7); conv_b: (1,). Returns (N, 1, H, W)."""
    N, C, H, W = x.shape
    HW = H * W
    L = (H + 2 * PAD) * W + 2 * PAD

    # Free (bitcast) reshape: last dim H*W is lane-dense (multiple of 128 for
    # realistic spatial sizes); no HBM-side spatial padding.
    x2 = x.astype(jnp.float32).reshape(N, C, HW)
    w_flat = conv_w.reshape(-1).astype(jnp.float32)              # (98,)
    b = conv_b.astype(jnp.float32)                               # (1,)

    ct = _choose_c_tile(C, HW, c_block_bytes)
    nc = C // ct

    kernel = functools.partial(_spatial_attn_kernel, H=H, W=W, C=C, HW=HW, L=L)

    # VMEM budget: double-buffered input/output blocks + scratch, with headroom.
    blk_bytes = ct * HW * 4
    scratch_bytes = (2 * HW + 2 * L) * 4
    vmem_need = 2 * blk_bytes + 2 * HW * 4 + scratch_bytes
    vmem_limit = int(min(32 * 2 ** 20, max(8 * 2 ** 20, 2 * vmem_need)))

    out_flat = pl.pallas_call(
        kernel,
        out_shape=jax.ShapeDtypeStruct((N, 1, HW), jnp.float32),
        grid_spec=pltpu.PrefetchScalarGridSpec(
            num_scalar_prefetch=0,
            grid=(N, nc),
            in_specs=[
                pl.BlockSpec((1, ct, HW), lambda n, c: (n, c, 0)),
                pl.BlockSpec(memory_space=pltpu.SMEM),
                pl.BlockSpec(memory_space=pltpu.SMEM),
            ],
            out_specs=pl.BlockSpec((1, 1, HW), lambda n, c: (n, 0, 0)),
            scratch_shapes=[
                pltpu.VMEM((1, HW), jnp.float32),   # running channel sum
                pltpu.VMEM((1, HW), jnp.float32),   # running channel max
                pltpu.VMEM((2, L), jnp.float32),    # flat padded avg/max planes
            ],
        ),
        compiler_params=pltpu.CompilerParams(
            dimension_semantics=("parallel", "arbitrary"),
            vmem_limit_bytes=vmem_limit),
    )(x2, w_flat, b)

    return out_flat.reshape(N, 1, H, W)                          # free reshape


def _reference(x, conv_w, conv_b):
    avg = jnp.mean(x, axis=1, keepdims=True)
    mx = jnp.max(x, axis=1, keepdims=True)
    cat = jnp.concatenate([avg, mx], axis=1)                     # (N, 2, H, W)
    y = jax.lax.conv_general_dilated(
        cat, conv_w, window_strides=(1, 1), padding=((PAD, PAD), (PAD, PAD)),
        dimension_numbers=("NCHW", "OIHW", "NCHW"),
        precision=jax.lax.Precision.HIGHEST)
    y = y + conv_b.reshape(1, 1, 1, 1)
    return jax.nn.sigmoid(y)


if __name__ == "__main__":
    key = jax.random.PRNGKey(0)
    kx, kw_key, kb_key = jax.random.split(key, 3)

    N, C, H, W = 2, 4, 16, 16
    x = jax.random.normal(kx, (N, C, H, W), dtype=jnp.float32)

    # Deterministic parameter init (Conv2d(2, 1, 7, padding=3) shapes).
    fan_in = 2 * K * K
    bound = 1.0 / (fan_in ** 0.5)
    conv_w = jax.random.uniform(kw_key, (1, 2, K, K), jnp.float32, -bound, bound)
    conv_b = jax.random.uniform(kb_key, (1,), jnp.float32, -bound, bound)

    out = spatial_attention(x, conv_w, conv_b)
    out = jax.block_until_ready(out)

    ref = _reference(x, conv_w, conv_b)
    assert out.shape == (N, 1, H, W)
    assert jnp.allclose(out, ref, rtol=1e-4, atol=1e-4), "mismatch vs reference"

    print("KERNEL_OK")
</pallas_src>

<mosaic_0001>
module attributes {stable_mosaic.version = 11 : i64} {
  func.func @_spatial_attn_kernel(%arg0: i32, %arg1: i32, %arg2: memref<1x4x256xf32, #tpu.memory_space<vmem>>, %arg3: memref<98xf32, #tpu.memory_space<smem>>, %arg4: memref<1xf32, #tpu.memory_space<smem>>, %arg5: memref<1x1x256xf32, #tpu.memory_space<vmem>>, %arg6: memref<1x256xf32, #tpu.memory_space<vmem>>, %arg7: memref<1x256xf32, #tpu.memory_space<vmem>>, %arg8: memref<2x358xf32, #tpu.memory_space<vmem>>) attributes {dimension_semantics = [#tpu.dimension_semantics<parallel>, #tpu.dimension_semantics<arbitrary>], iteration_bounds = array<i64: 2, 1>, scalar_prefetch = 0 : i64, scratch_operands = 3 : i64, tpu.core_type = #tpu.core_type<tc>, window_params = [{transform_indices = @transform_0, window_bounds = array<i64: 1, 4, 256>}, {transform_indices = @transform_1, window_bounds = array<i64: 98>}, {transform_indices = @transform_2, window_bounds = array<i64: 1>}, {transform_indices = @transform_3, window_bounds = array<i64: 1, 1, 256>}]} {
    %c0_i32 = arith.constant 0 : i32
    %0 = arith.cmpi eq, %arg1, %c0_i32 : i32
    %1 = arith.extui %0 : i1 to i32
    %c0_i32_0 = arith.constant 0 : i32
    %2 = arith.cmpi ne, %1, %c0_i32_0 : i32
    scf.if %2 {
      %cst_14 = arith.constant 0.000000e+00 : f32
      %18 = vector.broadcast %cst_14 : f32 to vector<1x256xf32>
      %c0_15 = arith.constant 0 : index
      %c0_16 = arith.constant 0 : index
      %19 = vector.load %arg6[%c0_15, %c0_16] : memref<1x256xf32, #tpu.memory_space<vmem>>, vector<1x256xf32>
      tpu.vector_store %arg6[%c0_15, %c0_16], %18 {strides = array<i32>} : memref<1x256xf32, #tpu.memory_space<vmem>>, vector<1x256xf32>,
      %cst_17 = arith.constant 0xFF800000 : f32
      %20 = vector.broadcast %cst_17 : f32 to vector<1x256xf32>
      %c0_18 = arith.constant 0 : index
      %c0_19 = arith.constant 0 : index
      %21 = vector.load %arg7[%c0_18, %c0_19] : memref<1x256xf32, #tpu.memory_space<vmem>>, vector<1x256xf32>
      tpu.vector_store %arg7[%c0_18, %c0_19], %20 {strides = array<i32>} : memref<1x256xf32, #tpu.memory_space<vmem>>, vector<1x256xf32>,
    } else {
    }
    %c0 = arith.constant 0 : index
    %c0_1 = arith.constant 0 : index
    %c0_2 = arith.constant 0 : index
    %3 = vector.load %arg2[%c0, %c0_1, %c0_2] : memref<1x4x256xf32, #tpu.memory_space<vmem>>, vector<1x4x256xf32>
    %4 = vector.shape_cast %3 : vector<1x4x256xf32> to vector<4x256xf32>
    %c0_3 = arith.constant 0 : index
    %c0_4 = arith.constant 0 : index
    %5 = vector.load %arg6[%c0_3, %c0_4] : memref<1x256xf32, #tpu.memory_space<vmem>>, vector<1x256xf32>
    %cst = arith.constant dense<0.000000e+00> : vector<256xf32>
    %6 = vector.multi_reduction <add>, %4, %cst [0] : vector<4x256xf32> to vector<256xf32>
    %7 = vector.shape_cast %6 : vector<256xf32> to vector<1x256xf32>
    %8 = arith.addf %5, %7 : vector<1x256xf32>
    %c0_5 = arith.constant 0 : index
    %c0_6 = arith.constant 0 : index
    %9 = vector.load %arg6[%c0_5, %c0_6] : memref<1x256xf32, #tpu.memory_space<vmem>>, vector<1x256xf32>
    tpu.vector_store %arg6[%c0_5, %c0_6], %8 {strides = array<i32>} : memref<1x256xf32, #tpu.memory_space<vmem>>, vector<1x256xf32>,
    %c0_7 = arith.constant 0 : index
    %c0_8 = arith.constant 0 : index
    %10 = vector.load %arg7[%c0_7, %c0_8] : memref<1x256xf32, #tpu.memory_space<vmem>>, vector<1x256xf32>
    %cst_9 = arith.constant dense<0xFF800000> : vector<256xf32>
    %11 = vector.multi_reduction <maximumf>, %4, %cst_9 [0] : vector<4x256xf32> to vector<256xf32>
    %12 = vector.shape_cast %11 : vector<256xf32> to vector<1x256xf32>
    %13 = arith.maximumf %10, %12 : vector<1x256xf32>
    %c0_10 = arith.constant 0 : index
    %c0_11 = arith.constant 0 : index
    %14 = vector.load %arg7[%c0_10, %c0_11] : memref<1x256xf32, #tpu.memory_space<vmem>>, vector<1x256xf32>
    tpu.vector_store %arg7[%c0_10, %c0_11], %13 {strides = array<i32>} : memref<1x256xf32, #tpu.memory_space<vmem>>, vector<1x256xf32>,
    %c0_i32_12 = arith.constant 0 : i32
    %15 = arith.cmpi eq, %arg1, %c0_i32_12 : i32
    %16 = arith.extui %15 : i1 to i32
    %c0_i32_13 = arith.constant 0 : i32
    %17 = arith.cmpi ne, %16, %c0_i32_13 : i32
    scf.if %17 {
      %c0_14 = arith.constant 0 : index
      %c0_15 = arith.constant 0 : index
      %18 = vector.load %arg6[%c0_14, %c0_15] : memref<1x256xf32, #tpu.memory_space<vmem>>, vector<1x256xf32>
      %cst_16 = arith.constant 2.500000e-01 : f32
      %19 = vector.broadcast %cst_16 : f32 to vector<1x256xf32>
      %20 = arith.mulf %18, %19 : vector<1x256xf32>
      %c0_17 = arith.constant 0 : index
      %c0_18 = arith.constant 0 : index
      %21 = vector.load %arg7[%c0_17, %c0_18] : memref<1x256xf32, #tpu.memory_space<vmem>>, vector<1x256xf32>
      %cst_19 = arith.constant 0.000000e+00 : f32
      %22 = vector.broadcast %cst_19 : f32 to vector<2x358xf32>
      %c0_20 = arith.constant 0 : index
      %c0_21 = arith.constant 0 : index
      %23 = vector.load %arg8[%c0_20, %c0_21] : memref<2x358xf32, #tpu.memory_space<vmem>>, vector<2x358xf32>
      tpu.vector_store %arg8[%c0_20, %c0_21], %22 {strides = array<i32>} : memref<2x358xf32, #tpu.memory_space<vmem>>, vector<2x358xf32>,
      %c0_22 = arith.constant 0 : index
      %c51 = arith.constant 51 : index
      %24 = vector.load %arg8[%c0_22, %c51] : memref<2x358xf32, #tpu.memory_space<vmem>>, vector<1x256xf32>
      tpu.vector_store %arg8[%c0_22, %c51], %20 {strides = array<i32>} : memref<2x358xf32, #tpu.memory_space<vmem>>, vector<1x256xf32>,
      %c1 = arith.constant 1 : index
      %c51_23 = arith.constant 51 : index
      %25 = vector.load %arg8[%c1, %c51_23] : memref<2x358xf32, #tpu.memory_space<vmem>>, vector<1x256xf32>
      tpu.vector_store %arg8[%c1, %c51_23], %21 {strides = array<i32>} : memref<2x358xf32, #tpu.memory_space<vmem>>, vector<1x256xf32>,
      %c0_24 = arith.constant 0 : index
      %26 = memref.load %arg3[%c0_24] : memref<98xf32, #tpu.memory_space<smem>>
      %c1_25 = arith.constant 1 : index
      %27 = memref.load %arg3[%c1_25] : memref<98xf32, #tpu.memory_space<smem>>
      %c2 = arith.constant 2 : index
      %28 = memref.load %arg3[%c2] : memref<98xf32, #tpu.memory_space<smem>>
      %c3 = arith.constant 3 : index
      %29 = memref.load %arg3[%c3] : memref<98xf32, #tpu.memory_space<smem>>
      %c4 = arith.constant 4 : index
      %30 = memref.load %arg3[%c4] : memref<98xf32, #tpu.memory_space<smem>>
      %c5 = arith.constant 5 : index
      %31 = memref.load %arg3[%c5] : memref<98xf32, #tpu.memory_space<smem>>
      %c6 = arith.constant 6 : index
      %32 = memref.load %arg3[%c6] : memref<98xf32, #tpu.memory_space<smem>>
      %c7 = arith.constant 7 : index
      %33 = memref.load %arg3[%c7] : memref<98xf32, #tpu.memory_space<smem>>
      %c8 = arith.constant 8 : index
      %34 = memref.load %arg3[%c8] : memref<98xf32, #tpu.memory_space<smem>>
      %c9 = arith.constant 9 : index
      %35 = memref.load %arg3[%c9] : memref<98xf32, #tpu.memory_space<smem>>
      %c10 = arith.constant 10 : index
      %36 = memref.load %arg3[%c10] : memref<98xf32, #tpu.memory_space<smem>>
      %c11 = arith.constant 11 : index
      %37 = memref.load %arg3[%c11] : memref<98xf32, #tpu.memory_space<smem>>
      %c12 = arith.constant 12 : index
      %38 = memref.load %arg3[%c12] : memref<98xf32, #tpu.memory_space<smem>>
      %c13 = arith.constant 13 : index
      %39 = memref.load %arg3[%c13] : memref<98xf32, #tpu.memory_space<smem>>
      %c14 = arith.constant 14 : index
      %40 = memref.load %arg3[%c14] : memref<98xf32, #tpu.memory_space<smem>>
      %c15 = arith.constant 15 : index
      %41 = memref.load %arg3[%c15] : memref<98xf32, #tpu.memory_space<smem>>
      %c16 = arith.constant 16 : index
      %42 = memref.load %arg3[%c16] : memref<98xf32, #tpu.memory_space<smem>>
      %c17 = arith.constant 17 : index
      %43 = memref.load %arg3[%c17] : memref<98xf32, #tpu.memory_space<smem>>
      %c18 = arith.constant 18 : index
      %44 = memref.load %arg3[%c18] : memref<98xf32, #tpu.memory_space<smem>>
      %c19 = arith.constant 19 : index
      %45 = memref.load %arg3[%c19] : memref<98xf32, #tpu.memory_space<smem>>
      %c20 = arith.constant 20 : index
      %46 = memref.load %arg3[%c20] : memref<98xf32, #tpu.memory_space<smem>>
      %c21 = arith.constant 21 : index
      %47 = memref.load %arg3[%c21] : memref<98xf32, #tpu.memory_space<smem>>
      %c22 = arith.constant 22 : index
      %48 = memref.load %arg3[%c22] : memref<98xf32, #tpu.memory_space<smem>>
      %c23 = arith.constant 23 : index
      %49 = memref.load %arg3[%c23] : memref<98xf32, #tpu.memory_space<smem>>
      %c24 = arith.constant 24 : index
      %50 = memref.load %arg3[%c24] : memref<98xf32, #tpu.memory_space<smem>>
      %c25 = arith.constant 25 : index
      %51 = memref.load %arg3[%c25] : memref<98xf32, #tpu.memory_space<smem>>
      %c26 = arith.constant 26 : index
      %52 = memref.load %arg3[%c26] : memref<98xf32, #tpu.memory_space<smem>>
      %c27 = arith.constant 27 : index
      %53 = memref.load %arg3[%c27] : memref<98xf32, #tpu.memory_space<smem>>
      %c28 = arith.constant 28 : index
      %54 = memref.load %arg3[%c28] : memref<98xf32, #tpu.memory_space<smem>>
      %c29 = arith.constant 29 : index
      %55 = memref.load %arg3[%c29] : memref<98xf32, #tpu.memory_space<smem>>
      %c30 = arith.constant 30 : index
      %56 = memref.load %arg3[%c30] : memref<98xf32, #tpu.memory_space<smem>>
      %c31 = arith.constant 31 : index
      %57 = memref.load %arg3[%c31] : memref<98xf32, #tpu.memory_space<smem>>
      %c32 = arith.constant 32 : index
      %58 = memref.load %arg3[%c32] : memref<98xf32, #tpu.memory_space<smem>>
      %c33 = arith.constant 33 : index
      %59 = memref.load %arg3[%c33] : memref<98xf32, #tpu.memory_space<smem>>
      %c34 = arith.constant 34 : index
      %60 = memref.load %arg3[%c34] : memref<98xf32, #tpu.memory_space<smem>>
      %c35 = arith.constant 35 : index
      %61 = memref.load %arg3[%c35] : memref<98xf32, #tpu.memory_space<smem>>
      %c36 = arith.constant 36 : index
      %62 = memref.load %arg3[%c36] : memref<98xf32, #tpu.memory_space<smem>>
      %c37 = arith.constant 37 : index
      %63 = memref.load %arg3[%c37] : memref<98xf32, #tpu.memory_space<smem>>
      %c38 = arith.constant 38 : index
      %64 = memref.load %arg3[%c38] : memref<98xf32, #tpu.memory_space<smem>>
      %c39 = arith.constant 39 : index
      %65 = memref.load %arg3[%c39] : memref<98xf32, #tpu.memory_space<smem>>
      %c40 = arith.constant 40 : index
      %66 = memref.load %arg3[%c40] : memref<98xf32, #tpu.memory_space<smem>>
      %c41 = arith.constant 41 : index
      %67 = memref.load %arg3[%c41] : memref<98xf32, #tpu.memory_space<smem>>
      %c42 = arith.constant 42 : index
      %68 = memref.load %arg3[%c42] : memref<98xf32, #tpu.memory_space<smem>>
      %c43 = arith.constant 43 : index
      %69 = memref.load %arg3[%c43] : memref<98xf32, #tpu.memory_space<smem>>
      %c44 = arith.constant 44 : index
      %70 = memref.load %arg3[%c44] : memref<98xf32, #tpu.memory_space<smem>>
      %c45 = arith.constant 45 : index
      %71 = memref.load %arg3[%c45] : memref<98xf32, #tpu.memory_space<smem>>
      %c46 = arith.constant 46 : index
      %72 = memref.load %arg3[%c46] : memref<98xf32, #tpu.memory_space<smem>>
      %c47 = arith.constant 47 : index
      %73 = memref.load %arg3[%c47] : memref<98xf32, #tpu.memory_space<smem>>
      %c48 = arith.constant 48 : index
      %74 = memref.load %arg3[%c48] : memref<98xf32, #tpu.memory_space<smem>>
      %c49 = arith.constant 49 : index
      %75 = memref.load %arg3[%c49] : memref<98xf32, #tpu.memory_space<smem>>
      %c50 = arith.constant 50 : index
      %76 = memref.load %arg3[%c50] : memref<98xf32, #tpu.memory_space<smem>>
      %c51_26 = arith.constant 51 : index
      %77 = memref.load %arg3[%c51_26] : memref<98xf32, #tpu.memory_space<smem>>
      %c52 = arith.constant 52 : index
      %78 = memref.load %arg3[%c52] : memref<98xf32, #tpu.memory_space<smem>>
      %c53 = arith.constant 53 : index
      %79 = memref.load %arg3[%c53] : memref<98xf32, #tpu.memory_space<smem>>
      %c54 = arith.constant 54 : index
      %80 = memref.load %arg3[%c54] : memref<98xf32, #tpu.memory_space<smem>>
      %c55 = arith.constant 55 : index
      %81 = memref.load %arg3[%c55] : memref<98xf32, #tpu.memory_space<smem>>
      %c56 = arith.constant 56 : index
      %82 = memref.load %arg3[%c56] : memref<98xf32, #tpu.memory_space<smem>>
      %c57 = arith.constant 57 : index
      %83 = memref.load %arg3[%c57] : memref<98xf32, #tpu.memory_space<smem>>
      %c58 = arith.constant 58 : index
      %84 = memref.load %arg3[%c58] : memref<98xf32, #tpu.memory_space<smem>>
      %c59 = arith.constant 59 : index
      %85 = memref.load %arg3[%c59] : memref<98xf32, #tpu.memory_space<smem>>
      %c60 = arith.constant 60 : index
      %86 = memref.load %arg3[%c60] : memref<98xf32, #tpu.memory_space<smem>>
      %c61 = arith.constant 61 : index
      %87 = memref.load %arg3[%c61] : memref<98xf32, #tpu.memory_space<smem>>
      %c62 = arith.constant 62 : index
      %88 = memref.load %arg3[%c62] : memref<98xf32, #tpu.memory_space<smem>>
      %c63 = arith.constant 63 : index
      %89 = memref.load %arg3[%c63] : memref<98xf32, #tpu.memory_space<smem>>
      %c64 = arith.constant 64 : index
      %90 = memref.load %arg3[%c64] : memref<98xf32, #tpu.memory_space<smem>>
      %c65 = arith.constant 65 : index
      %91 = memref.load %arg3[%c65] : memref<98xf32, #tpu.memory_space<smem>>
      %c66 = arith.constant 66 : index
      %92 = memref.load %arg3[%c66] : memref<98xf32, #tpu.memory_space<smem>>
      %c67 = arith.constant 67 : index
      %93 = memref.load %arg3[%c67] : memref<98xf32, #tpu.memory_space<smem>>
      %c68 = arith.constant 68 : index
      %94 = memref.load %arg3[%c68] : memref<98xf32, #tpu.memory_space<smem>>
      %c69 = arith.constant 69 : index
      %95 = memref.load %arg3[%c69] : memref<98xf32, #tpu.memory_space<smem>>
      %c70 = arith.constant 70 : index
      %96 = memref.load %arg3[%c70] : memref<98xf32, #tpu.memory_space<smem>>
      %c71 = arith.constant 71 : index
      %97 = memref.load %arg3[%c71] : memref<98xf32, #tpu.memory_space<smem>>
      %c72 = arith.constant 72 : index
      %98 = memref.load %arg3[%c72] : memref<98xf32, #tpu.memory_space<smem>>
      %c73 = arith.constant 73 : index
      %99 = memref.load %arg3[%c73] : memref<98xf32, #tpu.memory_space<smem>>
      %c74 = arith.constant 74 : index
      %100 = memref.load %arg3[%c74] : memref<98xf32, #tpu.memory_space<smem>>
      %c75 = arith.constant 75 : index
      %101 = memref.load %arg3[%c75] : memref<98xf32, #tpu.memory_space<smem>>
      %c76 = arith.constant 76 : index
      %102 = memref.load %arg3[%c76] : memref<98xf32, #tpu.memory_space<smem>>
      %c77 = arith.constant 77 : index
      %103 = memref.load %arg3[%c77] : memref<98xf32, #tpu.memory_space<smem>>
      %c78 = arith.constant 78 : index
      %104 = memref.load %arg3[%c78] : memref<98xf32, #tpu.memory_space<smem>>
      %c79 = arith.constant 79 : index
      %105 = memref.load %arg3[%c79] : memref<98xf32, #tpu.memory_space<smem>>
      %c80 = arith.constant 80 : index
      %106 = memref.load %arg3[%c80] : memref<98xf32, #tpu.memory_space<smem>>
      %c81 = arith.constant 81 : index
      %107 = memref.load %arg3[%c81] : memref<98xf32, #tpu.memory_space<smem>>
      %c82 = arith.constant 82 : index
      %108 = memref.load %arg3[%c82] : memref<98xf32, #tpu.memory_space<smem>>
      %c83 = arith.constant 83 : index
      %109 = memref.load %arg3[%c83] : memref<98xf32, #tpu.memory_space<smem>>
      %c84 = arith.constant 84 : index
      %110 = memref.load %arg3[%c84] : memref<98xf32, #tpu.memory_space<smem>>
      %c85 = arith.constant 85 : index
      %111 = memref.load %arg3[%c85] : memref<98xf32, #tpu.memory_space<smem>>
      %c86 = arith.constant 86 : index
      %112 = memref.load %arg3[%c86] : memref<98xf32, #tpu.memory_space<smem>>
      %c87 = arith.constant 87 : index
      %113 = memref.load %arg3[%c87] : memref<98xf32, #tpu.memory_space<smem>>
      %c88 = arith.constant 88 : index
      %114 = memref.load %arg3[%c88] : memref<98xf32, #tpu.memory_space<smem>>
      %c89 = arith.constant 89 : index
      %115 = memref.load %arg3[%c89] : memref<98xf32, #tpu.memory_space<smem>>
      %c90 = arith.constant 90 : index
      %116 = memref.load %arg3[%c90] : memref<98xf32, #tpu.memory_space<smem>>
      %c91 = arith.constant 91 : index
      %117 = memref.load %arg3[%c91] : memref<98xf32, #tpu.memory_space<smem>>
      %c92 = arith.constant 92 : index
      %118 = memref.load %arg3[%c92] : memref<98xf32, #tpu.memory_space<smem>>
      %c93 = arith.constant 93 : index
      %119 = memref.load %arg3[%c93] : memref<98xf32, #tpu.memory_space<smem>>
      %c94 = arith.constant 94 : index
      %120 = memref.load %arg3[%c94] : memref<98xf32, #tpu.memory_space<smem>>
      %c95 = arith.constant 95 : index
      %121 = memref.load %arg3[%c95] : memref<98xf32, #tpu.memory_space<smem>>
      %c96 = arith.constant 96 : index
      %122 = memref.load %arg3[%c96] : memref<98xf32, #tpu.memory_space<smem>>
      %c97 = arith.constant 97 : index
      %123 = memref.load %arg3[%c97] : memref<98xf32, #tpu.memory_space<smem>>
      %c0_27 = arith.constant 0 : index
      %124 = memref.load %arg4[%c0_27] : memref<1xf32, #tpu.memory_space<smem>>
      %125 = tpu.iota {dimensions = array<i32: 1>} : vector<1x256xi32>
      %c16_i32 = arith.constant 16 : i32
      %c0_i32_28 = arith.constant 0 : i32
      %126 = arith.cmpi eq, %c16_i32, %c0_i32_28 : i32
      %c1_i32 = arith.constant 1 : i32
      %127 = arith.select %126, %c1_i32, %c16_i32 : i32
      %128 = vector.broadcast %127 : i32 to vector<1x256xi32>
      %129 = arith.remsi %125, %128 : vector<1x256xi32>
      %c0_i32_29 = arith.constant 0 : i32
      %130 = vector.broadcast %c0_i32_29 : i32 to vector<1x256xi32>
      %131 = arith.cmpi ne, %129, %130 : vector<1x256xi32>
      %c0_i32_30 = arith.constant 0 : i32
      %132 = vector.broadcast %c0_i32_30 : i32 to vector<1x256xi32>
      %133 = arith.cmpi slt, %129, %132 : vector<1x256xi32>
      %c0_i32_31 = arith.constant 0 : i32
      %134 = arith.cmpi slt, %127, %c0_i32_31 : i32
      %135 = vector.broadcast %134 : i1 to vector<1x256xi1>
      %136 = vector.broadcast %135 : vector<1x256xi1> to vector<1x256xi1>
      %137 = arith.xori %133, %136 : vector<1x256xi1>
      %138 = arith.andi %137, %131 : vector<1x256xi1>
      %139 = vector.broadcast %127 : i32 to vector<1x256xi32>
      %140 = arith.addi %129, %139 : vector<1x256xi32>
      %141 = arith.select %138, %140, %129 : vector<1x256xi1>, vector<1x256xi32>
      %142 = vector.broadcast %124 : f32 to vector<1x256xf32>
      %cst_32 = arith.constant 0.000000e+00 : f32
      %143 = vector.broadcast %cst_32 : f32 to vector<1x256xf32>
      %c0_33 = arith.constant 0 : index
      %c0_34 = arith.constant 0 : index
      %144 = vector.load %arg8[%c0_33, %c0_34] : memref<2x358xf32, #tpu.memory_space<vmem>>, vector<1x256xf32>
      %145 = vector.broadcast %26 : f32 to vector<1x256xf32>
      %146 = arith.mulf %145, %144 : vector<1x256xf32>
      %147 = arith.addf %143, %146 : vector<1x256xf32>
      %c1_35 = arith.constant 1 : index
      %c0_36 = arith.constant 0 : index
      %148 = vector.load %arg8[%c1_35, %c0_36] : memref<2x358xf32, #tpu.memory_space<vmem>>, vector<1x256xf32>
      %149 = vector.broadcast %75 : f32 to vector<1x256xf32>
      %150 = arith.mulf %149, %148 : vector<1x256xf32>
      %151 = arith.addf %147, %150 : vector<1x256xf32>
      %c0_37 = arith.constant 0 : index
      %c16_38 = arith.constant 16 : index
      %152 = vector.load %arg8[%c0_37, %c16_38] : memref<2x358xf32, #tpu.memory_space<vmem>>, vector<1x256xf32>
      %153 = vector.broadcast %33 : f32 to vector<1x256xf32>
      %154 = arith.mulf %153, %152 : vector<1x256xf32>
      %155 = arith.addf %151, %154 : vector<1x256xf32>
      %c1_39 = arith.constant 1 : index
      %c16_40 = arith.constant 16 : index
      %156 = vector.load %arg8[%c1_39, %c16_40] : memref<2x358xf32, #tpu.memory_space<vmem>>, vector<1x256xf32>
      %157 = vector.broadcast %82 : f32 to vector<1x256xf32>
      %158 = arith.mulf %157, %156 : vector<1x256xf32>
      %159 = arith.addf %155, %158 : vector<1x256xf32>
      %c0_41 = arith.constant 0 : index
      %c32_42 = arith.constant 32 : index
      %160 = vector.load %arg8[%c0_41, %c32_42] : memref<2x358xf32, #tpu.memory_space<vmem>>, vector<1x256xf32>
      %161 = vector.broadcast %40 : f32 to vector<1x256xf32>
      %162 = arith.mulf %161, %160 : vector<1x256xf32>
      %163 = arith.addf %159, %162 : vector<1x256xf32>
      %c1_43 = arith.constant 1 : index
      %c32_44 = arith.constant 32 : index
      %164 = vector.load %arg8[%c1_43, %c32_44] : memref<2x358xf32, #tpu.memory_space<vmem>>, vector<1x256xf32>
      %165 = vector.broadcast %89 : f32 to vector<1x256xf32>
      %166 = arith.mulf %165, %164 : vector<1x256xf32>
      %167 = arith.addf %163, %166 : vector<1x256xf32>
      %c0_45 = arith.constant 0 : index
      %c48_46 = arith.constant 48 : index
      %168 = vector.load %arg8[%c0_45, %c48_46] : memref<2x358xf32, #tpu.memory_space<vmem>>, vector<1x256xf32>
      %169 = vector.broadcast %47 : f32 to vector<1x256xf32>
      %170 = arith.mulf %169, %168 : vector<1x256xf32>
      %171 = arith.addf %167, %170 : vector<1x256xf32>
      %c1_47 = arith.constant 1 : index
      %c48_48 = arith.constant 48 : index
      %172 = vector.load %arg8[%c1_47, %c48_48] : memref<2x358xf32, #tpu.memory_space<vmem>>, vector<1x256xf32>
      %173 = vector.broadcast %96 : f32 to vector<1x256xf32>
      %174 = arith.mulf %173, %172 : vector<1x256xf32>
      %175 = arith.addf %171, %174 : vector<1x256xf32>
      %c0_49 = arith.constant 0 : index
      %c64_50 = arith.constant 64 : index
      %176 = vector.load %arg8[%c0_49, %c64_50] : memref<2x358xf32, #tpu.memory_space<vmem>>, vector<1x256xf32>
      %177 = vector.broadcast %54 : f32 to vector<1x256xf32>
      %178 = arith.mulf %177, %176 : vector<1x256xf32>
      %179 = arith.addf %175, %178 : vector<1x256xf32>
      %c1_51 = arith.constant 1 : index
      %c64_52 = arith.constant 64 : index
      %180 = vector.load %arg8[%c1_51, %c64_52] : memref<2x358xf32, #tpu.memory_space<vmem>>, vector<1x256xf32>
      %181 = vector.broadcast %103 : f32 to vector<1x256xf32>
      %182 = arith.mulf %181, %180 : vector<1x256xf32>
      %183 = arith.addf %179, %182 : vector<1x256xf32>
      %c0_53 = arith.constant 0 : index
      %c80_54 = arith.constant 80 : index
      %184 = vector.load %arg8[%c0_53, %c80_54] : memref<2x358xf32, #tpu.memory_space<vmem>>, vector<1x256xf32>
      %185 = vector.broadcast %61 : f32 to vector<1x256xf32>
      %186 = arith.mulf %185, %184 : vector<1x256xf32>
      %187 = arith.addf %183, %186 : vector<1x256xf32>
      %c1_55 = arith.constant 1 : index
      %c80_56 = arith.constant 80 : index
      %188 = vector.load %arg8[%c1_55, %c80_56] : memref<2x358xf32, #tpu.memory_space<vmem>>, vector<1x256xf32>
      %189 = vector.broadcast %110 : f32 to vector<1x256xf32>
      %190 = arith.mulf %189, %188 : vector<1x256xf32>
      %191 = arith.addf %187, %190 : vector<1x256xf32>
      %c0_57 = arith.constant 0 : index
      %c96_58 = arith.constant 96 : index
      %192 = vector.load %arg8[%c0_57, %c96_58] : memref<2x358xf32, #tpu.memory_space<vmem>>, vector<1x256xf32>
      %193 = vector.broadcast %68 : f32 to vector<1x256xf32>
      %194 = arith.mulf %193, %192 : vector<1x256xf32>
      %195 = arith.addf %191, %194 : vector<1x256xf32>
      %c1_59 = arith.constant 1 : index
      %c96_60 = arith.constant 96 : index
      %196 = vector.load %arg8[%c1_59, %c96_60] : memref<2x358xf32, #tpu.memory_space<vmem>>, vector<1x256xf32>
      %197 = vector.broadcast %117 : f32 to vector<1x256xf32>
      %198 = arith.mulf %197, %196 : vector<1x256xf32>
      %199 = arith.addf %195, %198 : vector<1x256xf32>
      %c3_i32 = arith.constant 3 : i32
      %200 = vector.broadcast %c3_i32 : i32 to vector<1x256xi32>
      %201 = arith.cmpi sge, %141, %200 : vector<1x256xi32>
      %c19_i32 = arith.constant 19 : i32
      %202 = vector.broadcast %c19_i32 : i32 to vector<1x256xi32>
      %203 = arith.cmpi slt, %141, %202 : vector<1x256xi32>
      %204 = arith.andi %201, %203 : vector<1x256xi1>
      %cst_61 = arith.constant 0.000000e+00 : f32
      %205 = vector.broadcast %cst_61 : f32 to vector<1x256xf32>
      %206 = arith.select %204, %199, %205 : vector<1x256xi1>, vector<1x256xf32>
      %207 = arith.addf %142, %206 : vector<1x256xf32>
      %cst_62 = arith.constant 0.000000e+00 : f32
      %208 = vector.broadcast %cst_62 : f32 to vector<1x256xf32>
      %c0_63 = arith.constant 0 : index
      %c1_64 = arith.constant 1 : index
      %209 = vector.load %arg8[%c0_63, %c1_64] : memref<2x358xf32, #tpu.memory_space<vmem>>, vector<1x256xf32>
      %210 = vector.broadcast %27 : f32 to vector<1x256xf32>
      %211 = arith.mulf %210, %209 : vector<1x256xf32>
      %212 = arith.addf %208, %211 : vector<1x256xf32>
      %c1_65 = arith.constant 1 : index
      %c1_66 = arith.constant 1 : index
      %213 = vector.load %arg8[%c1_65, %c1_66] : memref<2x358xf32, #tpu.memory_space<vmem>>, vector<1x256xf32>
      %214 = vector.broadcast %76 : f32 to vector<1x256xf32>
      %215 = arith.mulf %214, %213 : vector<1x256xf32>
      %216 = arith.addf %212, %215 : vector<1x256xf32>
      %c0_67 = arith.constant 0 : index
      %c17_68 = arith.constant 17 : index
      %217 = vector.load %arg8[%c0_67, %c17_68] : memref<2x358xf32, #tpu.memory_space<vmem>>, vector<1x256xf32>
      %218 = vector.broadcast %34 : f32 to vector<1x256xf32>
      %219 = arith.mulf %218, %217 : vector<1x256xf32>
      %220 = arith.addf %216, %219 : vector<1x256xf32>
      %c1_69 = arith.constant 1 : index
      %c17_70 = arith.constant 17 : index
      %221 = vector.load %arg8[%c1_69, %c17_70] : memref<2x358xf32, #tpu.memory_space<vmem>>, vector<1x256xf32>
      %222 = vector.broadcast %83 : f32 to vector<1x256xf32>
      %223 = arith.mulf %222, %221 : vector<1x256xf32>
      %224 = arith.addf %220, %223 : vector<1x256xf32>
      %c0_71 = arith.constant 0 : index
      %c33_72 = arith.constant 33 : index
      %225 = vector.load %arg8[%c0_71, %c33_72] : memref<2x358xf32, #tpu.memory_space<vmem>>, vector<1x256xf32>
      %226 = vector.broadcast %41 : f32 to vector<1x256xf32>
      %227 = arith.mulf %226, %225 : vector<1x256xf32>
      %228 = arith.addf %224, %227 : vector<1x256xf32>
      %c1_73 = arith.constant 1 : index
      %c33_74 = arith.constant 33 : index
      %229 = vector.load %arg8[%c1_73, %c33_74] : memref<2x358xf32, #tpu.memory_space<vmem>>, vector<1x256xf32>
      %230 = vector.broadcast %90 : f32 to vector<1x256xf32>
      %231 = arith.mulf %230, %229 : vector<1x256xf32>
      %232 = arith.addf %228, %231 : vector<1x256xf32>
      %c0_75 = arith.constant 0 : index
      %c49_76 = arith.constant 49 : index
      %233 = vector.load %arg8[%c0_75, %c49_76] : memref<2x358xf32, #tpu.memory_space<vmem>>, vector<1x256xf32>
      %234 = vector.broadcast %48 : f32 to vector<1x256xf32>
      %235 = arith.mulf %234, %233 : vector<1x256xf32>
      %236 = arith.addf %232, %235 : vector<1x256xf32>
      %c1_77 = arith.constant 1 : index
      %c49_78 = arith.constant 49 : index
      %237 = vector.load %arg8[%c1_77, %c49_78] : memref<2x358xf32, #tpu.memory_space<vmem>>, vector<1x256xf32>
      %238 = vector.broadcast %97 : f32 to vector<1x256xf32>
      %239 = arith.mulf %238, %237 : vector<1x256xf32>
      %240 = arith.addf %236, %239 : vector<1x256xf32>
      %c0_79 = arith.constant 0 : index
      %c65_80 = arith.constant 65 : index
      %241 = vector.load %arg8[%c0_79, %c65_80] : memref<2x358xf32, #tpu.memory_space<vmem>>, vector<1x256xf32>
      %242 = vector.broadcast %55 : f32 to vector<1x256xf32>
      %243 = arith.mulf %242, %241 : vector<1x256xf32>
      %244 = arith.addf %240, %243 : vector<1x256xf32>
      %c1_81 = arith.constant 1 : index
      %c65_82 = arith.constant 65 : index
      %245 = vector.load %arg8[%c1_81, %c65_82] : memref<2x358xf32, #tpu.memory_space<vmem>>, vector<1x256xf32>
      %246 = vector.broadcast %104 : f32 to vector<1x256xf32>
      %247 = arith.mulf %246, %245 : vector<1x256xf32>
      %248 = arith.addf %244, %247 : vector<1x256xf32>
      %c0_83 = arith.constant 0 : index
      %c81_84 = arith.constant 81 : index
      %249 = vector.load %arg8[%c0_83, %c81_84] : memref<2x358xf32, #tpu.memory_space<vmem>>, vector<1x256xf32>
      %250 = vector.broadcast %62 : f32 to vector<1x256xf32>
      %251 = arith.mulf %250, %249 : vector<1x256xf32>
      %252 = arith.addf %248, %251 : vector<1x256xf32>
      %c1_85 = arith.constant 1 : index
      %c81_86 = arith.constant 81 : index
      %253 = vector.load %arg8[%c1_85, %c81_86] : memref<2x358xf32, #tpu.memory_space<vmem>>, vector<1x256xf32>
      %254 = vector.broadcast %111 : f32 to vector<1x256xf32>
      %255 = arith.mulf %254, %253 : vector<1x256xf32>
      %256 = arith.addf %252, %255 : vector<1x256xf32>
      %c0_87 = arith.constant 0 : index
      %c97_88 = arith.constant 97 : index
      %257 = vector.load %arg8[%c0_87, %c97_88] : memref<2x358xf32, #tpu.memory_space<vmem>>, vector<1x256xf32>
      %258 = vector.broadcast %69 : f32 to vector<1x256xf32>
      %259 = arith.mulf %258, %257 : vector<1x256xf32>
      %260 = arith.addf %256, %259 : vector<1x256xf32>
      %c1_89 = arith.constant 1 : index
      %c97_90 = arith.constant 97 : index
      %261 = vector.load %arg8[%c1_89, %c97_90] : memref<2x358xf32, #tpu.memory_space<vmem>>, vector<1x256xf32>
      %262 = vector.broadcast %118 : f32 to vector<1x256xf32>
      %263 = arith.mulf %262, %261 : vector<1x256xf32>
      %264 = arith.addf %260, %263 : vector<1x256xf32>
      %c2_i32 = arith.constant 2 : i32
      %265 = vector.broadcast %c2_i32 : i32 to vector<1x256xi32>
      %266 = arith.cmpi sge, %141, %265 : vector<1x256xi32>
      %c18_i32 = arith.constant 18 : i32
      %267 = vector.broadcast %c18_i32 : i32 to vector<1x256xi32>
      %268 = arith.cmpi slt, %141, %267 : vector<1x256xi32>
      %269 = arith.andi %266, %268 : vector<1x256xi1>
      %cst_91 = arith.constant 0.000000e+00 : f32
      %270 = vector.broadcast %cst_91 : f32 to vector<1x256xf32>
      %271 = arith.select %269, %264, %270 : vector<1x256xi1>, vector<1x256xf32>
      %272 = arith.addf %207, %271 : vector<1x256xf32>
      %cst_92 = arith.constant 0.000000e+00 : f32
      %273 = vector.broadcast %cst_92 : f32 to vector<1x256xf32>
      %c0_93 = arith.constant 0 : index
      %c2_94 = arith.constant 2 : index
      %274 = vector.load %arg8[%c0_93, %c2_94] : memref<2x358xf32, #tpu.memory_space<vmem>>, vector<1x256xf32>
      %275 = vector.broadcast %28 : f32 to vector<1x256xf32>
      %276 = arith.mulf %275, %274 : vector<1x256xf32>
      %277 = arith.addf %273, %276 : vector<1x256xf32>
      %c1_95 = arith.constant 1 : index
      %c2_96 = arith.constant 2 : index
      %278 = vector.load %arg8[%c1_95, %c2_96] : memref<2x358xf32, #tpu.memory_space<vmem>>, vector<1x256xf32>
      %279 = vector.broadcast %77 : f32 to vector<1x256xf32>
      %280 = arith.mulf %279, %278 : vector<1x256xf32>
      %281 = arith.addf %277, %280 : vector<1x256xf32>
      %c0_97 = arith.constant 0 : index
      %c18_98 = arith.constant 18 : index
      %282 = vector.load %arg8[%c0_97, %c18_98] : memref<2x358xf32, #tpu.memory_space<vmem>>, vector<1x256xf32>
      %283 = vector.broadcast %35 : f32 to vector<1x256xf32>
      %284 = arith.mulf %283, %282 : vector<1x256xf32>
      %285 = arith.addf %281, %284 : vector<1x256xf32>
      %c1_99 = arith.constant 1 : index
      %c18_100 = arith.constant 18 : index
      %286 = vector.load %arg8[%c1_99, %c18_100] : memref<2x358xf32, #tpu.memory_space<vmem>>, vector<1x256xf32>
      %287 = vector.broadcast %84 : f32 to vector<1x256xf32>
      %288 = arith.mulf %287, %286 : vector<1x256xf32>
      %289 = arith.addf %285, %288 : vector<1x256xf32>
      %c0_101 = arith.constant 0 : index
      %c34_102 = arith.constant 34 : index
      %290 = vector.load %arg8[%c0_101, %c34_102] : memref<2x358xf32, #tpu.memory_space<vmem>>, vector<1x256xf32>
      %291 = vector.broadcast %42 : f32 to vector<1x256xf32>
      %292 = arith.mulf %291, %290 : vector<1x256xf32>
      %293 = arith.addf %289, %292 : vector<1x256xf32>
      %c1_103 = arith.constant 1 : index
      %c34_104 = arith.constant 34 : index
      %294 = vector.load %arg8[%c1_103, %c34_104] : memref<2x358xf32, #tpu.memory_space<vmem>>, vector<1x256xf32>
      %295 = vector.broadcast %91 : f32 to vector<1x256xf32>
      %296 = arith.mulf %295, %294 : vector<1x256xf32>
      %297 = arith.addf %293, %296 : vector<1x256xf32>
      %c0_105 = arith.constant 0 : index
      %c50_106 = arith.constant 50 : index
      %298 = vector.load %arg8[%c0_105, %c50_106] : memref<2x358xf32, #tpu.memory_space<vmem>>, vector<1x256xf32>
      %299 = vector.broadcast %49 : f32 to vector<1x256xf32>
      %300 = arith.mulf %299, %298 : vector<1x256xf32>
      %301 = arith.addf %297, %300 : vector<1x256xf32>
      %c1_107 = arith.constant 1 : index
      %c50_108 = arith.constant 50 : index
      %302 = vector.load %arg8[%c1_107, %c50_108] : memref<2x358xf32, #tpu.memory_space<vmem>>, vector<1x256xf32>
      %303 = vector.broadcast %98 : f32 to vector<1x256xf32>
      %304 = arith.mulf %303, %302 : vector<1x256xf32>
      %305 = arith.addf %301, %304 : vector<1x256xf32>
      %c0_109 = arith.constant 0 : index
      %c66_110 = arith.constant 66 : index
      %306 = vector.load %arg8[%c0_109, %c66_110] : memref<2x358xf32, #tpu.memory_space<vmem>>, vector<1x256xf32>
      %307 = vector.broadcast %56 : f32 to vector<1x256xf32>
      %308 = arith.mulf %307, %306 : vector<1x256xf32>
      %309 = arith.addf %305, %308 : vector<1x256xf32>
      %c1_111 = arith.constant 1 : index
      %c66_112 = arith.constant 66 : index
      %310 = vector.load %arg8[%c1_111, %c66_112] : memref<2x358xf32, #tpu.memory_space<vmem>>, vector<1x256xf32>
      %311 = vector.broadcast %105 : f32 to vector<1x256xf32>
      %312 = arith.mulf %311, %310 : vector<1x256xf32>
      %313 = arith.addf %309, %312 : vector<1x256xf32>
      %c0_113 = arith.constant 0 : index
      %c82_114 = arith.constant 82 : index
      %314 = vector.load %arg8[%c0_113, %c82_114] : memref<2x358xf32, #tpu.memory_space<vmem>>, vector<1x256xf32>
      %315 = vector.broadcast %63 : f32 to vector<1x256xf32>
      %316 = arith.mulf %315, %314 : vector<1x256xf32>
      %317 = arith.addf %313, %316 : vector<1x256xf32>
      %c1_115 = arith.constant 1 : index
      %c82_116 = arith.constant 82 : index
      %318 = vector.load %arg8[%c1_115, %c82_116] : memref<2x358xf32, #tpu.memory_space<vmem>>, vector<1x256xf32>
      %319 = vector.broadcast %112 : f32 to vector<1x256xf32>
      %320 = arith.mulf %319, %318 : vector<1x256xf32>
      %321 = arith.addf %317, %320 : vector<1x256xf32>
      %c0_117 = arith.constant 0 : index
      %c98 = arith.constant 98 : index
      %322 = vector.load %arg8[%c0_117, %c98] : memref<2x358xf32, #tpu.memory_space<vmem>>, vector<1x256xf32>
      %323 = vector.broadcast %70 : f32 to vector<1x256xf32>
      %324 = arith.mulf %323, %322 : vector<1x256xf32>
      %325 = arith.addf %321, %324 : vector<1x256xf32>
      %c1_118 = arith.constant 1 : index
      %c98_119 = arith.constant 98 : index
      %326 = vector.load %arg8[%c1_118, %c98_119] : memref<2x358xf32, #tpu.memory_space<vmem>>, vector<1x256xf32>
      %327 = vector.broadcast %119 : f32 to vector<1x256xf32>
      %328 = arith.mulf %327, %326 : vector<1x256xf32>
      %329 = arith.addf %325, %328 : vector<1x256xf32>
      %c1_i32_120 = arith.constant 1 : i32
      %330 = vector.broadcast %c1_i32_120 : i32 to vector<1x256xi32>
      %331 = arith.cmpi sge, %141, %330 : vector<1x256xi32>
      %c17_i32 = arith.constant 17 : i32
      %332 = vector.broadcast %c17_i32 : i32 to vector<1x256xi32>
      %333 = arith.cmpi slt, %141, %332 : vector<1x256xi32>
      %334 = arith.andi %331, %333 : vector<1x256xi1>
      %cst_121 = arith.constant 0.000000e+00 : f32
      %335 = vector.broadcast %cst_121 : f32 to vector<1x256xf32>
      %336 = arith.select %334, %329, %335 : vector<1x256xi1>, vector<1x256xf32>
      %337 = arith.addf %272, %336 : vector<1x256xf32>
      %cst_122 = arith.constant 0.000000e+00 : f32
      %338 = vector.broadcast %cst_122 : f32 to vector<1x256xf32>
      %c0_123 = arith.constant 0 : index
      %c3_124 = arith.constant 3 : index
      %339 = vector.load %arg8[%c0_123, %c3_124] : memref<2x358xf32, #tpu.memory_space<vmem>>, vector<1x256xf32>
      %340 = vector.broadcast %29 : f32 to vector<1x256xf32>
      %341 = arith.mulf %340, %339 : vector<1x256xf32>
      %342 = arith.addf %338, %341 : vector<1x256xf32>
      %c1_125 = arith.constant 1 : index
      %c3_126 = arith.constant 3 : index
      %343 = vector.load %arg8[%c1_125, %c3_126] : memref<2x358xf32, #tpu.memory_space<vmem>>, vector<1x256xf32>
      %344 = vector.broadcast %78 : f32 to vector<1x256xf32>
      %345 = arith.mulf %344, %343 : vector<1x256xf32>
      %346 = arith.addf %342, %345 : vector<1x256xf32>
      %c0_127 = arith.constant 0 : index
      %c19_128 = arith.constant 19 : index
      %347 = vector.load %arg8[%c0_127, %c19_128] : memref<2x358xf32, #tpu.memory_space<vmem>>, vector<1x256xf32>
      %348 = vector.broadcast %36 : f32 to vector<1x256xf32>
      %349 = arith.mulf %348, %347 : vector<1x256xf32>
      %350 = arith.addf %346, %349 : vector<1x256xf32>
      %c1_129 = arith.constant 1 : index
      %c19_130 = arith.constant 19 : index
      %351 = vector.load %arg8[%c1_129, %c19_130] : memref<2x358xf32, #tpu.memory_space<vmem>>, vector<1x256xf32>
      %352 = vector.broadcast %85 : f32 to vector<1x256xf32>
      %353 = arith.mulf %352, %351 : vector<1x256xf32>
      %354 = arith.addf %350, %353 : vector<1x256xf32>
      %c0_131 = arith.constant 0 : index
      %c35_132 = arith.constant 35 : index
      %355 = vector.load %arg8[%c0_131, %c35_132] : memref<2x358xf32, #tpu.memory_space<vmem>>, vector<1x256xf32>
      %356 = vector.broadcast %43 : f32 to vector<1x256xf32>
      %357 = arith.mulf %356, %355 : vector<1x256xf32>
      %358 = arith.addf %354, %357 : vector<1x256xf32>
      %c1_133 = arith.constant 1 : index
      %c35_134 = arith.constant 35 : index
      %359 = vector.load %arg8[%c1_133, %c35_134] : memref<2x358xf32, #tpu.memory_space<vmem>>, vector<1x256xf32>
      %360 = vector.broadcast %92 : f32 to vector<1x256xf32>
      %361 = arith.mulf %360, %359 : vector<1x256xf32>
      %362 = arith.addf %358, %361 : vector<1x256xf32>
      %c0_135 = arith.constant 0 : index
      %c51_136 = arith.constant 51 : index
      %363 = vector.load %arg8[%c0_135, %c51_136] : memref<2x358xf32, #tpu.memory_space<vmem>>, vector<1x256xf32>
      %364 = vector.broadcast %50 : f32 to vector<1x256xf32>
      %365 = arith.mulf %364, %363 : vector<1x256xf32>
      %366 = arith.addf %362, %365 : vector<1x256xf32>
      %c1_137 = arith.constant 1 : index
      %c51_138 = arith.constant 51 : index
      %367 = vector.load %arg8[%c1_137, %c51_138] : memref<2x358xf32, #tpu.memory_space<vmem>>, vector<1x256xf32>
      %368 = vector.broadcast %99 : f32 to vector<1x256xf32>
      %369 = arith.mulf %368, %367 : vector<1x256xf32>
      %370 = arith.addf %366, %369 : vector<1x256xf32>
      %c0_139 = arith.constant 0 : index
      %c67_140 = arith.constant 67 : index
      %371 = vector.load %arg8[%c0_139, %c67_140] : memref<2x358xf32, #tpu.memory_space<vmem>>, vector<1x256xf32>
      %372 = vector.broadcast %57 : f32 to vector<1x256xf32>
      %373 = arith.mulf %372, %371 : vector<1x256xf32>
      %374 = arith.addf %370, %373 : vector<1x256xf32>
      %c1_141 = arith.constant 1 : index
      %c67_142 = arith.constant 67 : index
      %375 = vector.load %arg8[%c1_141, %c67_142] : memref<2x358xf32, #tpu.memory_space<vmem>>, vector<1x256xf32>
      %376 = vector.broadcast %106 : f32 to vector<1x256xf32>
      %377 = arith.mulf %376, %375 : vector<1x256xf32>
      %378 = arith.addf %374, %377 : vector<1x256xf32>
      %c0_143 = arith.constant 0 : index
      %c83_144 = arith.constant 83 : index
      %379 = vector.load %arg8[%c0_143, %c83_144] : memref<2x358xf32, #tpu.memory_space<vmem>>, vector<1x256xf32>
      %380 = vector.broadcast %64 : f32 to vector<1x256xf32>
      %381 = arith.mulf %380, %379 : vector<1x256xf32>
      %382 = arith.addf %378, %381 : vector<1x256xf32>
      %c1_145 = arith.constant 1 : index
      %c83_146 = arith.constant 83 : index
      %383 = vector.load %arg8[%c1_145, %c83_146] : memref<2x358xf32, #tpu.memory_space<vmem>>, vector<1x256xf32>
      %384 = vector.broadcast %113 : f32 to vector<1x256xf32>
      %385 = arith.mulf %384, %383 : vector<1x256xf32>
      %386 = arith.addf %382, %385 : vector<1x256xf32>
      %c0_147 = arith.constant 0 : index
      %c99 = arith.constant 99 : index
      %387 = vector.load %arg8[%c0_147, %c99] : memref<2x358xf32, #tpu.memory_space<vmem>>, vector<1x256xf32>
      %388 = vector.broadcast %71 : f32 to vector<1x256xf32>
      %389 = arith.mulf %388, %387 : vector<1x256xf32>
      %390 = arith.addf %386, %389 : vector<1x256xf32>
      %c1_148 = arith.constant 1 : index
      %c99_149 = arith.constant 99 : index
      %391 = vector.load %arg8[%c1_148, %c99_149] : memref<2x358xf32, #tpu.memory_space<vmem>>, vector<1x256xf32>
      %392 = vector.broadcast %120 : f32 to vector<1x256xf32>
      %393 = arith.mulf %392, %391 : vector<1x256xf32>
      %394 = arith.addf %390, %393 : vector<1x256xf32>
      %c0_i32_150 = arith.constant 0 : i32
      %395 = vector.broadcast %c0_i32_150 : i32 to vector<1x256xi32>
      %396 = arith.cmpi sge, %141, %395 : vector<1x256xi32>
      %c16_i32_151 = arith.constant 16 : i32
      %397 = vector.broadcast %c16_i32_151 : i32 to vector<1x256xi32>
      %398 = arith.cmpi slt, %141, %397 : vector<1x256xi32>
      %399 = arith.andi %396, %398 : vector<1x256xi1>
      %cst_152 = arith.constant 0.000000e+00 : f32
      %400 = vector.broadcast %cst_152 : f32 to vector<1x256xf32>
      %401 = arith.select %399, %394, %400 : vector<1x256xi1>, vector<1x256xf32>
      %402 = arith.addf %337, %401 : vector<1x256xf32>
      %cst_153 = arith.constant 0.000000e+00 : f32
      %403 = vector.broadcast %cst_153 : f32 to vector<1x256xf32>
      %c0_154 = arith.constant 0 : index
      %c4_155 = arith.constant 4 : index
      %404 = vector.load %arg8[%c0_154, %c4_155] : memref<2x358xf32, #tpu.memory_space<vmem>>, vector<1x256xf32>
      %405 = vector.broadcast %30 : f32 to vector<1x256xf32>
      %406 = arith.mulf %405, %404 : vector<1x256xf32>
      %407 = arith.addf %403, %406 : vector<1x256xf32>
      %c1_156 = arith.constant 1 : index
      %c4_157 = arith.constant 4 : index
      %408 = vector.load %arg8[%c1_156, %c4_157] : memref<2x358xf32, #tpu.memory_space<vmem>>, vector<1x256xf32>
      %409 = vector.broadcast %79 : f32 to vector<1x256xf32>
      %410 = arith.mulf %409, %408 : vector<1x256xf32>
      %411 = arith.addf %407, %410 : vector<1x256xf32>
      %c0_158 = arith.constant 0 : index
      %c20_159 = arith.constant 20 : index
      %412 = vector.load %arg8[%c0_158, %c20_159] : memref<2x358xf32, #tpu.memory_space<vmem>>, vector<1x256xf32>
      %413 = vector.broadcast %37 : f32 to vector<1x256xf32>
      %414 = arith.mulf %413, %412 : vector<1x256xf32>
      %415 = arith.addf %411, %414 : vector<1x256xf32>
      %c1_160 = arith.constant 1 : index
      %c20_161 = arith.constant 20 : index
      %416 = vector.load %arg8[%c1_160, %c20_161] : memref<2x358xf32, #tpu.memory_space<vmem>>, vector<1x256xf32>
      %417 = vector.broadcast %86 : f32 to vector<1x256xf32>
      %418 = arith.mulf %417, %416 : vector<1x256xf32>
      %419 = arith.addf %415, %418 : vector<1x256xf32>
      %c0_162 = arith.constant 0 : index
      %c36_163 = arith.constant 36 : index
      %420 = vector.load %arg8[%c0_162, %c36_163] : memref<2x358xf32, #tpu.memory_space<vmem>>, vector<1x256xf32>
      %421 = vector.broadcast %44 : f32 to vector<1x256xf32>
      %422 = arith.mulf %421, %420 : vector<1x256xf32>
      %423 = arith.addf %419, %422 : vector<1x256xf32>
      %c1_164 = arith.constant 1 : index
      %c36_165 = arith.constant 36 : index
      %424 = vector.load %arg8[%c1_164, %c36_165] : memref<2x358xf32, #tpu.memory_space<vmem>>, vector<1x256xf32>
      %425 = vector.broadcast %93 : f32 to vector<1x256xf32>
      %426 = arith.mulf %425, %424 : vector<1x256xf32>
      %427 = arith.addf %423, %426 : vector<1x256xf32>
      %c0_166 = arith.constant 0 : index
      %c52_167 = arith.constant 52 : index
      %428 = vector.load %arg8[%c0_166, %c52_167] : memref<2x358xf32, #tpu.memory_space<vmem>>, vector<1x256xf32>
      %429 = vector.broadcast %51 : f32 to vector<1x256xf32>
      %430 = arith.mulf %429, %428 : vector<1x256xf32>
      %431 = arith.addf %427, %430 : vector<1x256xf32>
      %c1_168 = arith.constant 1 : index
      %c52_169 = arith.constant 52 : index
      %432 = vector.load %arg8[%c1_168, %c52_169] : memref<2x358xf32, #tpu.memory_space<vmem>>, vector<1x256xf32>
      %433 = vector.broadcast %100 : f32 to vector<1x256xf32>
      %434 = arith.mulf %433, %432 : vector<1x256xf32>
      %435 = arith.addf %431, %434 : vector<1x256xf32>
      %c0_170 = arith.constant 0 : index
      %c68_171 = arith.constant 68 : index
      %436 = vector.load %arg8[%c0_170, %c68_171] : memref<2x358xf32, #tpu.memory_space<vmem>>, vector<1x256xf32>
      %437 = vector.broadcast %58 : f32 to vector<1x256xf32>
      %438 = arith.mulf %437, %436 : vector<1x256xf32>
      %439 = arith.addf %435, %438 : vector<1x256xf32>
      %c1_172 = arith.constant 1 : index
      %c68_173 = arith.constant 68 : index
      %440 = vector.load %arg8[%c1_172, %c68_173] : memref<2x358xf32, #tpu.memory_space<vmem>>, vector<1x256xf32>
      %441 = vector.broadcast %107 : f32 to vector<1x256xf32>
      %442 = arith.mulf %441, %440 : vector<1x256xf32>
      %443 = arith.addf %439, %442 : vector<1x256xf32>
      %c0_174 = arith.constant 0 : index
      %c84_175 = arith.constant 84 : index
      %444 = vector.load %arg8[%c0_174, %c84_175] : memref<2x358xf32, #tpu.memory_space<vmem>>, vector<1x256xf32>
      %445 = vector.broadcast %65 : f32 to vector<1x256xf32>
      %446 = arith.mulf %445, %444 : vector<1x256xf32>
      %447 = arith.addf %443, %446 : vector<1x256xf32>
      %c1_176 = arith.constant 1 : index
      %c84_177 = arith.constant 84 : index
      %448 = vector.load %arg8[%c1_176, %c84_177] : memref<2x358xf32, #tpu.memory_space<vmem>>, vector<1x256xf32>
      %449 = vector.broadcast %114 : f32 to vector<1x256xf32>
      %450 = arith.mulf %449, %448 : vector<1x256xf32>
      %451 = arith.addf %447, %450 : vector<1x256xf32>
      %c0_178 = arith.constant 0 : index
      %c100 = arith.constant 100 : index
      %452 = vector.load %arg8[%c0_178, %c100] : memref<2x358xf32, #tpu.memory_space<vmem>>, vector<1x256xf32>
      %453 = vector.broadcast %72 : f32 to vector<1x256xf32>
      %454 = arith.mulf %453, %452 : vector<1x256xf32>
      %455 = arith.addf %451, %454 : vector<1x256xf32>
      %c1_179 = arith.constant 1 : index
      %c100_180 = arith.constant 100 : index
      %456 = vector.load %arg8[%c1_179, %c100_180] : memref<2x358xf32, #tpu.memory_space<vmem>>, vector<1x256xf32>
      %457 = vector.broadcast %121 : f32 to vector<1x256xf32>
      %458 = arith.mulf %457, %456 : vector<1x256xf32>
      %459 = arith.addf %455, %458 : vector<1x256xf32>
      %c-1_i32 = arith.constant -1 : i32
      %460 = vector.broadcast %c-1_i32 : i32 to vector<1x256xi32>
      %461 = arith.cmpi sge, %141, %460 : vector<1x256xi32>
      %c15_i32 = arith.constant 15 : i32
      %462 = vector.broadcast %c15_i32 : i32 to vector<1x256xi32>
      %463 = arith.cmpi slt, %141, %462 : vector<1x256xi32>
      %464 = arith.andi %461, %463 : vector<1x256xi1>
      %cst_181 = arith.constant 0.000000e+00 : f32
      %465 = vector.broadcast %cst_181 : f32 to vector<1x256xf32>
      %466 = arith.select %464, %459, %465 : vector<1x256xi1>, vector<1x256xf32>
      %467 = arith.addf %402, %466 : vector<1x256xf32>
      %cst_182 = arith.constant 0.000000e+00 : f32
      %468 = vector.broadcast %cst_182 : f32 to vector<1x256xf32>
      %c0_183 = arith.constant 0 : index
      %c5_184 = arith.constant 5 : index
      %469 = vector.load %arg8[%c0_183, %c5_184] : memref<2x358xf32, #tpu.memory_space<vmem>>, vector<1x256xf32>
      %470 = vector.broadcast %31 : f32 to vector<1x256xf32>
      %471 = arith.mulf %470, %469 : vector<1x256xf32>
      %472 = arith.addf %468, %471 : vector<1x256xf32>
      %c1_185 = arith.constant 1 : index
      %c5_186 = arith.constant 5 : index
      %473 = vector.load %arg8[%c1_185, %c5_186] : memref<2x358xf32, #tpu.memory_space<vmem>>, vector<1x256xf32>
      %474 = vector.broadcast %80 : f32 to vector<1x256xf32>
      %475 = arith.mulf %474, %473 : vector<1x256xf32>
      %476 = arith.addf %472, %475 : vector<1x256xf32>
      %c0_187 = arith.constant 0 : index
      %c21_188 = arith.constant 21 : index
      %477 = vector.load %arg8[%c0_187, %c21_188] : memref<2x358xf32, #tpu.memory_space<vmem>>, vector<1x256xf32>
      %478 = vector.broadcast %38 : f32 to vector<1x256xf32>
      %479 = arith.mulf %478, %477 : vector<1x256xf32>
      %480 = arith.addf %476, %479 : vector<1x256xf32>
      %c1_189 = arith.constant 1 : index
      %c21_190 = arith.constant 21 : index
      %481 = vector.load %arg8[%c1_189, %c21_190] : memref<2x358xf32, #tpu.memory_space<vmem>>, vector<1x256xf32>
      %482 = vector.broadcast %87 : f32 to vector<1x256xf32>
      %483 = arith.mulf %482, %481 : vector<1x256xf32>
      %484 = arith.addf %480, %483 : vector<1x256xf32>
      %c0_191 = arith.constant 0 : index
      %c37_192 = arith.constant 37 : index
      %485 = vector.load %arg8[%c0_191, %c37_192] : memref<2x358xf32, #tpu.memory_space<vmem>>, vector<1x256xf32>
      %486 = vector.broadcast %45 : f32 to vector<1x256xf32>
      %487 = arith.mulf %486, %485 : vector<1x256xf32>
      %488 = arith.addf %484, %487 : vector<1x256xf32>
      %c1_193 = arith.constant 1 : index
      %c37_194 = arith.constant 37 : index
      %489 = vector.load %arg8[%c1_193, %c37_194] : memref<2x358xf32, #tpu.memory_space<vmem>>, vector<1x256xf32>
      %490 = vector.broadcast %94 : f32 to vector<1x256xf32>
      %491 = arith.mulf %490, %489 : vector<1x256xf32>
      %492 = arith.addf %488, %491 : vector<1x256xf32>
      %c0_195 = arith.constant 0 : index
      %c53_196 = arith.constant 53 : index
      %493 = vector.load %arg8[%c0_195, %c53_196] : memref<2x358xf32, #tpu.memory_space<vmem>>, vector<1x256xf32>
      %494 = vector.broadcast %52 : f32 to vector<1x256xf32>
      %495 = arith.mulf %494, %493 : vector<1x256xf32>
      %496 = arith.addf %492, %495 : vector<1x256xf32>
      %c1_197 = arith.constant 1 : index
      %c53_198 = arith.constant 53 : index
      %497 = vector.load %arg8[%c1_197, %c53_198] : memref<2x358xf32, #tpu.memory_space<vmem>>, vector<1x256xf32>
      %498 = vector.broadcast %101 : f32 to vector<1x256xf32>
      %499 = arith.mulf %498, %497 : vector<1x256xf32>
      %500 = arith.addf %496, %499 : vector<1x256xf32>
      %c0_199 = arith.constant 0 : index
      %c69_200 = arith.constant 69 : index
      %501 = vector.load %arg8[%c0_199, %c69_200] : memref<2x358xf32, #tpu.memory_space<vmem>>, vector<1x256xf32>
      %502 = vector.broadcast %59 : f32 to vector<1x256xf32>
      %503 = arith.mulf %502, %501 : vector<1x256xf32>
      %504 = arith.addf %500, %503 : vector<1x256xf32>
      %c1_201 = arith.constant 1 : index
      %c69_202 = arith.constant 69 : index
      %505 = vector.load %arg8[%c1_201, %c69_202] : memref<2x358xf32, #tpu.memory_space<vmem>>, vector<1x256xf32>
      %506 = vector.broadcast %108 : f32 to vector<1x256xf32>
      %507 = arith.mulf %506, %505 : vector<1x256xf32>
      %508 = arith.addf %504, %507 : vector<1x256xf32>
      %c0_203 = arith.constant 0 : index
      %c85_204 = arith.constant 85 : index
      %509 = vector.load %arg8[%c0_203, %c85_204] : memref<2x358xf32, #tpu.memory_space<vmem>>, vector<1x256xf32>
      %510 = vector.broadcast %66 : f32 to vector<1x256xf32>
      %511 = arith.mulf %510, %509 : vector<1x256xf32>
      %512 = arith.addf %508, %511 : vector<1x256xf32>
      %c1_205 = arith.constant 1 : index
      %c85_206 = arith.constant 85 : index
      %513 = vector.load %arg8[%c1_205, %c85_206] : memref<2x358xf32, #tpu.memory_space<vmem>>, vector<1x256xf32>
      %514 = vector.broadcast %115 : f32 to vector<1x256xf32>
      %515 = arith.mulf %514, %513 : vector<1x256xf32>
      %516 = arith.addf %512, %515 : vector<1x256xf32>
      %c0_207 = arith.constant 0 : index
      %c101 = arith.constant 101 : index
      %517 = vector.load %arg8[%c0_207, %c101] : memref<2x358xf32, #tpu.memory_space<vmem>>, vector<1x256xf32>
      %518 = vector.broadcast %73 : f32 to vector<1x256xf32>
      %519 = arith.mulf %518, %517 : vector<1x256xf32>
      %520 = arith.addf %516, %519 : vector<1x256xf32>
      %c1_208 = arith.constant 1 : index
      %c101_209 = arith.constant 101 : index
      %521 = vector.load %arg8[%c1_208, %c101_209] : memref<2x358xf32, #tpu.memory_space<vmem>>, vector<1x256xf32>
      %522 = vector.broadcast %122 : f32 to vector<1x256xf32>
      %523 = arith.mulf %522, %521 : vector<1x256xf32>
      %524 = arith.addf %520, %523 : vector<1x256xf32>
      %c-2_i32 = arith.constant -2 : i32
      %525 = vector.broadcast %c-2_i32 : i32 to vector<1x256xi32>
      %526 = arith.cmpi sge, %141, %525 : vector<1x256xi32>
      %c14_i32 = arith.constant 14 : i32
      %527 = vector.broadcast %c14_i32 : i32 to vector<1x256xi32>
      %528 = arith.cmpi slt, %141, %527 : vector<1x256xi32>
      %529 = arith.andi %526, %528 : vector<1x256xi1>
      %cst_210 = arith.constant 0.000000e+00 : f32
      %530 = vector.broadcast %cst_210 : f32 to vector<1x256xf32>
      %531 = arith.select %529, %524, %530 : vector<1x256xi1>, vector<1x256xf32>
      %532 = arith.addf %467, %531 : vector<1x256xf32>
      %cst_211 = arith.constant 0.000000e+00 : f32
      %533 = vector.broadcast %cst_211 : f32 to vector<1x256xf32>
      %c0_212 = arith.constant 0 : index
      %c6_213 = arith.constant 6 : index
      %534 = vector.load %arg8[%c0_212, %c6_213] : memref<2x358xf32, #tpu.memory_space<vmem>>, vector<1x256xf32>
      %535 = vector.broadcast %32 : f32 to vector<1x256xf32>
      %536 = arith.mulf %535, %534 : vector<1x256xf32>
      %537 = arith.addf %533, %536 : vector<1x256xf32>
      %c1_214 = arith.constant 1 : index
      %c6_215 = arith.constant 6 : index
      %538 = vector.load %arg8[%c1_214, %c6_215] : memref<2x358xf32, #tpu.memory_space<vmem>>, vector<1x256xf32>
      %539 = vector.broadcast %81 : f32 to vector<1x256xf32>
      %540 = arith.mulf %539, %538 : vector<1x256xf32>
      %541 = arith.addf %537, %540 : vector<1x256xf32>
      %c0_216 = arith.constant 0 : index
      %c22_217 = arith.constant 22 : index
      %542 = vector.load %arg8[%c0_216, %c22_217] : memref<2x358xf32, #tpu.memory_space<vmem>>, vector<1x256xf32>
      %543 = vector.broadcast %39 : f32 to vector<1x256xf32>
      %544 = arith.mulf %543, %542 : vector<1x256xf32>
      %545 = arith.addf %541, %544 : vector<1x256xf32>
      %c1_218 = arith.constant 1 : index
      %c22_219 = arith.constant 22 : index
      %546 = vector.load %arg8[%c1_218, %c22_219] : memref<2x358xf32, #tpu.memory_space<vmem>>, vector<1x256xf32>
      %547 = vector.broadcast %88 : f32 to vector<1x256xf32>
      %548 = arith.mulf %547, %546 : vector<1x256xf32>
      %549 = arith.addf %545, %548 : vector<1x256xf32>
      %c0_220 = arith.constant 0 : index
      %c38_221 = arith.constant 38 : index
      %550 = vector.load %arg8[%c0_220, %c38_221] : memref<2x358xf32, #tpu.memory_space<vmem>>, vector<1x256xf32>
      %551 = vector.broadcast %46 : f32 to vector<1x256xf32>
      %552 = arith.mulf %551, %550 : vector<1x256xf32>
      %553 = arith.addf %549, %552 : vector<1x256xf32>
      %c1_222 = arith.constant 1 : index
      %c38_223 = arith.constant 38 : index
      %554 = vector.load %arg8[%c1_222, %c38_223] : memref<2x358xf32, #tpu.memory_space<vmem>>, vector<1x256xf32>
      %555 = vector.broadcast %95 : f32 to vector<1x256xf32>
      %556 = arith.mulf %555, %554 : vector<1x256xf32>
      %557 = arith.addf %553, %556 : vector<1x256xf32>
      %c0_224 = arith.constant 0 : index
      %c54_225 = arith.constant 54 : index
      %558 = vector.load %arg8[%c0_224, %c54_225] : memref<2x358xf32, #tpu.memory_space<vmem>>, vector<1x256xf32>
      %559 = vector.broadcast %53 : f32 to vector<1x256xf32>
      %560 = arith.mulf %559, %558 : vector<1x256xf32>
      %561 = arith.addf %557, %560 : vector<1x256xf32>
      %c1_226 = arith.constant 1 : index
      %c54_227 = arith.constant 54 : index
      %562 = vector.load %arg8[%c1_226, %c54_227] : memref<2x358xf32, #tpu.memory_space<vmem>>, vector<1x256xf32>
      %563 = vector.broadcast %102 : f32 to vector<1x256xf32>
      %564 = arith.mulf %563, %562 : vector<1x256xf32>
      %565 = arith.addf %561, %564 : vector<1x256xf32>
      %c0_228 = arith.constant 0 : index
      %c70_229 = arith.constant 70 : index
      %566 = vector.load %arg8[%c0_228, %c70_229] : memref<2x358xf32, #tpu.memory_space<vmem>>, vector<1x256xf32>
      %567 = vector.broadcast %60 : f32 to vector<1x256xf32>
      %568 = arith.mulf %567, %566 : vector<1x256xf32>
      %569 = arith.addf %565, %568 : vector<1x256xf32>
      %c1_230 = arith.constant 1 : index
      %c70_231 = arith.constant 70 : index
      %570 = vector.load %arg8[%c1_230, %c70_231] : memref<2x358xf32, #tpu.memory_space<vmem>>, vector<1x256xf32>
      %571 = vector.broadcast %109 : f32 to vector<1x256xf32>
      %572 = arith.mulf %571, %570 : vector<1x256xf32>
      %573 = arith.addf %569, %572 : vector<1x256xf32>
      %c0_232 = arith.constant 0 : index
      %c86_233 = arith.constant 86 : index
      %574 = vector.load %arg8[%c0_232, %c86_233] : memref<2x358xf32, #tpu.memory_space<vmem>>, vector<1x256xf32>
      %575 = vector.broadcast %67 : f32 to vector<1x256xf32>
      %576 = arith.mulf %575, %574 : vector<1x256xf32>
      %577 = arith.addf %573, %576 : vector<1x256xf32>
      %c1_234 = arith.constant 1 : index
      %c86_235 = arith.constant 86 : index
      %578 = vector.load %arg8[%c1_234, %c86_235] : memref<2x358xf32, #tpu.memory_space<vmem>>, vector<1x256xf32>
      %579 = vector.broadcast %116 : f32 to vector<1x256xf32>
      %580 = arith.mulf %579, %578 : vector<1x256xf32>
      %581 = arith.addf %577, %580 : vector<1x256xf32>
      %c0_236 = arith.constant 0 : index
      %c102 = arith.constant 102 : index
      %582 = vector.load %arg8[%c0_236, %c102] : memref<2x358xf32, #tpu.memory_space<vmem>>, vector<1x256xf32>
      %583 = vector.broadcast %74 : f32 to vector<1x256xf32>
      %584 = arith.mulf %583, %582 : vector<1x256xf32>
      %585 = arith.addf %581, %584 : vector<1x256xf32>
      %c1_237 = arith.constant 1 : index
      %c102_238 = arith.constant 102 : index
      %586 = vector.load %arg8[%c1_237, %c102_238] : memref<2x358xf32, #tpu.memory_space<vmem>>, vector<1x256xf32>
      %587 = vector.broadcast %123 : f32 to vector<1x256xf32>
      %588 = arith.mulf %587, %586 : vector<1x256xf32>
      %589 = arith.addf %585, %588 : vector<1x256xf32>
      %c-3_i32 = arith.constant -3 : i32
      %590 = vector.broadcast %c-3_i32 : i32 to vector<1x256xi32>
      %591 = arith.cmpi sge, %141, %590 : vector<1x256xi32>
      %c13_i32 = arith.constant 13 : i32
      %592 = vector.broadcast %c13_i32 : i32 to vector<1x256xi32>
      %593 = arith.cmpi slt, %141, %592 : vector<1x256xi32>
      %594 = arith.andi %591, %593 : vector<1x256xi1>
      %cst_239 = arith.constant 0.000000e+00 : f32
      %595 = vector.broadcast %cst_239 : f32 to vector<1x256xf32>
      %596 = arith.select %594, %589, %595 : vector<1x256xi1>, vector<1x256xf32>
      %597 = arith.addf %532, %596 : vector<1x256xf32>
      %598 = arith.negf %597 : vector<1x256xf32>
      %599 = math.exp %598 : vector<1x256xf32>
      %cst_240 = arith.constant 1.000000e+00 : f32
      %600 = vector.broadcast %cst_240 : f32 to vector<1x256xf32>
      %601 = arith.addf %600, %599 : vector<1x256xf32>
      %602 = arith.divf %600, %601 : vector<1x256xf32>
      %c0_241 = arith.constant 0 : index
      %c0_242 = arith.constant 0 : index
      %c0_243 = arith.constant 0 : index
      %603 = vector.load %arg5[%c0_241, %c0_242, %c0_243] : memref<1x1x256xf32, #tpu.memory_space<vmem>>, vector<1x1x256xf32>
      %604 = vector.shape_cast %603 : vector<1x1x256xf32> to vector<1x256xf32>
      %605 = vector.shape_cast %602 : vector<1x256xf32> to vector<1x1x256xf32>
      tpu.vector_store %arg5[%c0_241, %c0_242, %c0_243], %605 {strides = array<i32>} : memref<1x1x256xf32, #tpu.memory_space<vmem>>, vector<1x1x256xf32>,
    } else {
    }
    return
  }
  func.func @transform_0(%arg0: i32, %arg1: i32) -> (i32, i32, i32) {
    %c0_i32 = arith.constant 0 : i32
    %c0_i32_0 = arith.constant 0 : i32
    return %arg0, %arg1, %c0_i32 : i32, i32, i32
  }
  func.func @transform_1(%arg0: i32, %arg1: i32) -> i32 {
    %c0_i32 = arith.constant 0 : i32
    %c0_i32_0 = arith.constant 0 : i32
    return %c0_i32 : i32
  }
  func.func @transform_2(%arg0: i32, %arg1: i32) -> i32 {
    %c0_i32 = arith.constant 0 : i32
    %c0_i32_0 = arith.constant 0 : i32
    return %c0_i32 : i32
  }
  func.func @transform_3(%arg0: i32, %arg1: i32) -> (i32, i32, i32) {
    %c0_i32 = arith.constant 0 : i32
    %c0_i32_0 = arith.constant 0 : i32
    %c0_i32_1 = arith.constant 0 : i32
    return %arg0, %c0_i32, %c0_i32_0 : i32, i32, i32
  }
}

</mosaic_0001>

<llo_original>
// kernel: tpu_custom_call.1
$region0: #{tpu_custom_call.1}
  #allocation0 [shape = 'u32[]', space=smem, size = 0x4, offset = 0x4, fixed_abs, tag = 'smem constant byte address 0x4 - core index']
  #allocation1 [shape = 'u32[72,128]{1,0:T(1,128)}', space=vmem, size = 0x9000, scoped, tag = 'internal scratch']
  #allocation2 [shape = 'f32[1,256]{1,0:T(1,128)}', space=vmem, size = 0x400, scoped, tag = 'scratch operand']
  #allocation3 [shape = 'f32[1,256]{1,0:T(1,128)}', space=vmem, size = 0x400, scoped, tag = 'scratch operand']
  #allocation4 [shape = 'f32[2,358]{1,0:T(2,128)}', space=vmem, size = 0xc00, scoped, tag = 'scratch operand']
  #allocation5 [shape = 'f32[1]{0:T(128)S(6)}', space=smem, size = 0x200, scoped, tag = 'scoped memory for tpu_custom_call.1']
  %s0 = inlined_call_operand.hbm [shape: f32[2,4,256], index: 0, kind: input, shape index: {}]
  %s1 = inlined_call_operand.vmem [shape: f32[98], index: 1, kind: input, shape index: {}]
  %s2 = inlined_call_operand.<no memory space> [shape: f32[1], index: 2, kind: input, shape index: {}]
  %s3 = inlined_call_operand.hbm [shape: f32[2,1,256], index: 3, kind: output, shape index: {}]
  %s4 = sld [smem:[#allocation0]]
  $region61: #{tpu_custom_call.1} parent=0
    _
  %s6 = ssub.s32 1, %s4
  %s7 = scalar_select 0, %s6, %s4
  %8 = sst [smem:[#allocation5]] %s2
  $region1: #{tpu_custom_call.1} parent=0
    #allocation6 [shape = 'u8[8192]{0}', space=vmem, size = 0x2000, scoped, tag = 'input window, operand 0']
    #allocation7 [shape = 's32[2]{0}', space=sflag, size = 0x8, scoped, tag = 'scoped memory for tpu_custom_call.1']
    #allocation8 [shape = 's32[2]{0}', space=sflag, size = 0x8, scoped, tag = 'scoped memory for tpu_custom_call.1']
    #allocation9 [shape = 's32[2]{0}', space=sflag, size = 0x8, scoped, tag = 'scoped memory for tpu_custom_call.1']
    #allocation10 [shape = 'u8[512]{0}', space=smem, size = 0x200, scoped, tag = 'input window, operand 1, single buffered']
    #allocation11 [shape = 'u8[2048]{0}', space=vmem, size = 0x800, scoped, tag = 'output window, operand 0']
    %9 = vsyncpa [#allocation7], 0
    %s10 = scalar_lea.sflag [#allocation7], 1
    %11 = vsyncpa %s10, 0
    %12 = vsyncpa [#allocation9], 0
    %13 = vsyncpa [#allocation8], 0
    %s14 = scalar_lea.sflag [#allocation8], 1
    %15 = vsyncpa %s14, 0
    loop: start=0, step=1, limit=4
    $region2: #{tpu_custom_call.1} parent=1 // loop_pre_header
      _
    $region3: #{tpu_custom_call.1} parent=1 // loop_header
      %s17 = sphi 0, %s21
      %p18 = scmp.ge.s32.totalorder %s17, 4
      %s24 = sphi 0, %s36
      %s25 = sphi 0, %s32
      %s26 = sphi 0, %s24
      %s27 = sphi 0, %s25
      %s28 = sphi 0, %s26
      %s29 = sphi 0, %s27
      %s41 = sphi 0, %s43
      %s44 = sphi 0, %s41
      %s45 = sphi 0, %s44
      %s61 = sphi 0, %s45
      %s65 = sphi 0, %s65
      %s67 = sphi 0, %s65
      %s68 = sphi 0, %s67
      %s82 = sphi 0, %s68
      %s86 = sphi 0, %s86
      %s88 = sphi 0, %s86
      %s89 = sphi 0, %s88
      %s103 = sphi 0, %s89
      %s109 = sphi 0, %s111
      %s112 = sphi 0, %s109
      %s113 = sphi 0, %s112
      %s129 = sphi 0, %s113
    $region4: #{tpu_custom_call.1} parent=1 // loop_header_branch
      %20 = sbr.rel (%p18) target = $region8
    $region5: #{tpu_custom_call.1} parent=1 // loop_body
      %s22 = ssub.s32 %s17, 1
      %s23 = ssub.s32 %s17, 2
      %s30 = sadd.s32 1, %s25
      %p31 = scmp.ge.s32.totalorder %s30, 1
      %s32 = scalar_select %p31, 0, %s30
      %s33 = sadd.s32 1, %s24
      %s34 = scalar_select %p31, %s33, %s24
      %p35 = scmp.ge.s32.totalorder %s34, 2
      %s36 = scalar_select %p35, 0, %s34
      %s37 = ssub.s32 %s24, %s36
      %s38 = ssub.s32 %s25, %s32
      %s39 = sor.u32 %s37, %s38
      %p40 = scmp.eq.s32.totalorder %s39, 0
      %s42 = sadd.s32 %s41, 1
      %s43 = scalar_select %p40, %s41, %s42
      %p46 = pneg %p40
      %p47 = scmp.eq.s32.totalorder %s17, 1
      %p48 = por %p46, %p47
      %p49 = scmp.ne.s32.totalorder %s41, %s44
      %p50 = scmp.eq.s32.totalorder %s17, 0
      %p51 = por %p49, %p50
      %p52 = scmp.ne.s32.totalorder %s41, %s44
      %p53 = scmp.eq.s32.totalorder %s22, 1
      %p54 = por %p52, %p53
      %p55 = scmp.ne.s32.totalorder %s44, %s45
      %p56 = scmp.eq.s32.totalorder %s22, 0
      %p57 = por %p55, %p56
      %p58 = scmp.ne.s32.totalorder %s44, %s45
      %p59 = scmp.eq.s32.totalorder %s23, 1
      %p60 = por %p58, %p59
      %p62 = scmp.ne.s32.totalorder %s45, %s61
      %p63 = scmp.eq.s32.totalorder %s23, 0
      %p64 = por %p62, %p63
      %s66 = sadd.s32 %s65, 1
      %p69 = scmp.eq.s32.totalorder %s17, 1
      %p70 = scmp.ne.s32.totalorder %s65, %s67
      %p71 = scmp.eq.s32.totalorder %s17, 0
      %p72 = por %p70, %p71
      %p73 = scmp.ne.s32.totalorder %s65, %s67
      %p74 = scmp.eq.s32.totalorder %s22, 1
      %p75 = por %p73, %p74
      %p76 = scmp.ne.s32.totalorder %s67, %s68
      %p77 = scmp.eq.s32.totalorder %s22, 0
      %p78 = por %p76, %p77
      %p79 = scmp.ne.s32.totalorder %s67, %s68
      %p80 = scmp.eq.s32.totalorder %s23, 1
      %p81 = por %p79, %p80
      %p83 = scmp.ne.s32.totalorder %s68, %s82
      %p84 = scmp.eq.s32.totalorder %s23, 0
      %p85 = por %p83, %p84
      %s87 = sadd.s32 %s86, 1
      %p90 = scmp.eq.s32.totalorder %s17, 1
      %p91 = scmp.ne.s32.totalorder %s86, %s88
      %p92 = scmp.eq.s32.totalorder %s17, 0
      %p93 = por %p91, %p92
      %p94 = scmp.ne.s32.totalorder %s86, %s88
      %p95 = scmp.eq.s32.totalorder %s22, 1
      %p96 = por %p94, %p95
      %p97 = scmp.ne.s32.totalorder %s88, %s89
      %p98 = scmp.eq.s32.totalorder %s22, 0
      %p99 = por %p97, %p98
      %p100 = scmp.ne.s32.totalorder %s88, %s89
      %p101 = scmp.eq.s32.totalorder %s23, 1
      %p102 = por %p100, %p101
      %p104 = scmp.ne.s32.totalorder %s89, %s103
      %p105 = scmp.eq.s32.totalorder %s23, 0
      %p106 = por %p104, %p105
      %s107 = ssub.s32 %s24, %s36
      %p108 = scmp.eq.s32.totalorder %s107, 0
      %s110 = sadd.s32 %s109, 1
      %s111 = scalar_select %p108, %s109, %s110
      %p114 = pneg %p108
      %p115 = scmp.eq.s32.totalorder %s17, 1
      %p116 = por %p114, %p115
      %p117 = scmp.ne.s32.totalorder %s109, %s112
      %p118 = scmp.eq.s32.totalorder %s17, 0
      %p119 = por %p117, %p118
      %p120 = scmp.ne.s32.totalorder %s109, %s112
      %p121 = scmp.eq.s32.totalorder %s22, 1
      %p122 = por %p120, %p121
      %p123 = scmp.ne.s32.totalorder %s112, %s113
      %p124 = scmp.eq.s32.totalorder %s22, 0
      %p125 = por %p123, %p124
      %p126 = scmp.ne.s32.totalorder %s112, %s113
      %p127 = scmp.eq.s32.totalorder %s23, 1
      %p128 = por %p126, %p127
      %p130 = scmp.ne.s32.totalorder %s113, %s129
      %p131 = scmp.eq.s32.totalorder %s23, 0
      %p132 = por %p130, %p131
      %p133 = scmp.le.s32.totalorder 1, %s17
      %p134 = scmp.lt.s32.totalorder %s17, 3
      %p135 = pnand %p133, %p134
      %p136 = pneg %p135
      // Predicated region
      $region9: #{tpu_custom_call.1} parent=5 // pred_check
        _
      $region10: #{tpu_custom_call.1} parent=5 // pred_check_branch
        %138 = sbr.rel (%p135) target = $region12
      $region11: #{tpu_custom_call.1} parent=5 // pred_region
        %s139 = ssub.s32 %s17, 1
        // Predicated region
        $region13: #{tpu_custom_call.1} parent=11 // pred_check
          %p140 = pneg %p78
        $region14: #{tpu_custom_call.1} parent=11 // pred_check_branch
          %142 = sbr.rel (%p140) target = $region16
        $region15: #{tpu_custom_call.1} parent=11 // pred_region
          %144 = vsyncadd [#allocation9], 0
          %s146 = sshll.u32 %s1, 4
          %s147 = int_to_ptr.vmem [resolvable:$true] %s146
          %149 = dma.vmem_to_smem %s147, 16, [#allocation10], [#allocation9]
        $region16: #{tpu_custom_call.1} parent=11 // pred_fallthru
          _
        // Predicated region
        $region17: #{tpu_custom_call.1} parent=11 // pred_check
          %p150 = pneg %p99
        $region18: #{tpu_custom_call.1} parent=11 // pred_check_branch
          %152 = sbr.rel (%p150) target = $region20
        $region19: #{tpu_custom_call.1} parent=11 // pred_region
          _
        $region20: #{tpu_custom_call.1} parent=11 // pred_fallthru
          _
      $region12: #{tpu_custom_call.1} parent=5 // pred_fallthru
        _
      %p153 = scmp.lt.s32.totalorder %s17, 2
      // Predicated region
      $region21: #{tpu_custom_call.1} parent=5 // pred_check
        %p154 = pneg %p153
      $region22: #{tpu_custom_call.1} parent=5 // pred_check_branch
        %156 = sbr.rel (%p154) target = $region24
      $region23: #{tpu_custom_call.1} parent=5 // pred_region
        // Predicated region
        $region25: #{tpu_custom_call.1} parent=23 // pred_check
          %p157 = pneg %p51
        $region26: #{tpu_custom_call.1} parent=23 // pred_check_branch
          %159 = sbr.rel (%p157) target = $region28
        $region27: #{tpu_custom_call.1} parent=23 // pred_region
          %s160 = sand.u32 %s41, 1
          %s161 = scalar_lea.sflag [#allocation7], %s160
          %s162 = sand.u32 %s41, 1
          %s163 = smul.addr %s162, 8
          %s164 = scalar_lea.vmem [#allocation6], %s163
          %166 = vsyncadd %s161, 0
          %s167 = smul.addr %s25, 2
          %s168 = smul.addr %s24, 2
          %s169 = sadd.s32 %s167, %s168
          %s170 = smul.addr %s169, 4
          %s171 = scalar_lea.hbm %s0, %s170
          %s173 = sshll.u32 %s171, 4
          %s174 = int_to_ptr.hbm [resolvable:$true] %s173
          %s175 = sshll.u32 %s164, 4
          %s176 = int_to_ptr.vmem [resolvable:$true] %s175
          %178 = dma.hbm_to_vmem [thread:$0]  %s174, 128, %s176, %s161
        $region28: #{tpu_custom_call.1} parent=23 // pred_fallthru
          _
      $region24: #{tpu_custom_call.1} parent=5 // pred_fallthru
        _
      %p179 = scmp.le.s32.totalorder 1, %s17
      %p180 = scmp.lt.s32.totalorder %s17, 3
      %p181 = pnand %p179, %p180
      %p182 = pneg %p181
      // Predicated region
      $region29: #{tpu_custom_call.1} parent=5 // pred_check
        _
      $region30: #{tpu_custom_call.1} parent=5 // pred_check_branch
        %184 = sbr.rel (%p181) target = $region32
      $region31: #{tpu_custom_call.1} parent=5 // pred_region
        %s185 = ssub.s32 %s17, 1
        %s186 = sand.u32 %s44, 1
        %s187 = scalar_lea.sflag [#allocation7], %s186
        %s188 = sand.u32 %s44, 1
        %s189 = smul.addr %s188, 8
        %s190 = scalar_lea.vmem [#allocation6], %s189
        // Predicated region
        $region33: #{tpu_custom_call.1} parent=31 // pred_check
          %p191 = pneg %p57
        $region34: #{tpu_custom_call.1} parent=31 // pred_check_branch
          %193 = sbr.rel (%p191) target = $region36
        $region35: #{tpu_custom_call.1} parent=31 // pred_region
          %195 = dma.done %s187, 128
        $region36: #{tpu_custom_call.1} parent=31 // pred_fallthru
          _
        // Predicated region
        $region37: #{tpu_custom_call.1} parent=31 // pred_check
          %p196 = pneg %p78
        $region38: #{tpu_custom_call.1} parent=31 // pred_check_branch
          %198 = sbr.rel (%p196) target = $region40
        $region39: #{tpu_custom_call.1} parent=31 // pred_region
          %200 = dma.done [#allocation9], 16
        $region40: #{tpu_custom_call.1} parent=31 // pred_fallthru
          _
        %201 = sfence
        %s202 = sand.u32 %s44, 1
        %s203 = scalar_lea.sflag [#allocation7], %s202
        %s204 = sand.u32 %s44, 1
        %s205 = smul.addr %s204, 8
        %s206 = scalar_lea.vmem [#allocation6], %s205
        %p207 = pneg %p57
        %p208 = pneg %p54
        %p209 = pneg %p78
        %p210 = pneg %p75
        %p211 = pneg %p99
        %p212 = pneg %p96
        %p213 = pneg %p125
        %p214 = pneg %p122
        %s215 = sand.u32 %s112, 1
        %s216 = scalar_lea.sflag [#allocation8], %s215
        %s217 = sand.u32 %s112, 1
        %s218 = smul.addr %s217, 2
        %s219 = scalar_lea.vmem [#allocation11], %s218
        %p220 = scmp.eq.s32.totalorder %s27, 0
        // Predicated region
        $region41: #{tpu_custom_call.1} parent=31 // pred_check
          %p221 = pneg %p220
        $region42: #{tpu_custom_call.1} parent=31 // pred_check_branch
          %223 = sbr.rel (%p221) target = $region44
        $region43: #{tpu_custom_call.1} parent=31 // pred_region
          %v224 = vlaneseq
          %vm225 = vcmp.ge.s32.totalorder %v224, 0
          %vm226 = vcmp.lt.s32.totalorder %v224, 256
          %vm227 = vmand %vm225, %vm226
          %228 = vst.msk [vmem:[#allocation2] sm:$0x3] %vm227, 0.0
          %229 = vst.msk [vmem:[#allocation3] sm:$0x3] %vm227, -inf
        $region44: #{tpu_custom_call.1} parent=31 // pred_fallthru
          _
        %v230 = vld [vmem:[%s190] sm:$0xff]
        %v231 = vld [vmem:[#allocation2] sm:$0x3]
        %233 = vst [vmem:[#allocation1] ss:$2 sm:$0xff] %v230
        %v234 = vld.sshfl [vmem:[#allocation1] sm:$0xff pattern:$0x75316420]
        %v235 = vld.sshfl [vmem:[#allocation1 + $0x8] sm:$0xff pattern:$0x75316420]
        %vm238 = vcmask 1043456
        %v239 = vsel %vm238, %v234, 0.0
        %v240 = vrot.slane %v239, 4
        %v241 = vadd.f32 %v239, %v240
        %v242 = vrot.slane %v241, 2
        %v243 = vadd.f32 %v241, %v242
        %v244 = vrot.slane %v243, 1
        %v245 = vadd.f32 %v243, %v244
        %v246 = vsel %vm238, %v235, 0.0
        %v247 = vrot.slane %v246, 4
        %v248 = vadd.f32 %v246, %v247
        %v249 = vrot.slane %v248, 2
        %v250 = vadd.f32 %v248, %v249
        %v251 = vrot.slane %v250, 1
        %v252 = vadd.f32 %v250, %v251
        %v255 = vrot.slane %v252, 7
        %vm256 = vcmask 1040384
        %v257 = vsel %vm256, %v245, %v255
        %v259 = vadd.f32 %v231, %v257
        %v260 = vlaneseq
        %vm261 = vcmp.ge.s32.totalorder %v260, 0
        %vm262 = vcmp.lt.s32.totalorder %v260, 256
        %vm263 = vmand %vm261, %vm262
        %264 = vst.msk [vmem:[#allocation2] sm:$0x3] %vm263, %v259
        %v265 = vld [vmem:[#allocation3] sm:$0x3]
        %266 = vst [vmem:[#allocation1] ss:$2 sm:$0xff] %v230
        %v267 = vld.sshfl [vmem:[#allocation1] sm:$0xff pattern:$0x75316420]
        %v268 = vld.sshfl [vmem:[#allocation1 + $0x8] sm:$0xff pattern:$0x75316420]
        %v271 = vsel %vm238, %v267, -inf
        %v272 = vrot.slane %v271, 4
        %v273 = vmax.f32 %v271, %v272
        %v274 = vrot.slane %v273, 2
        %v275 = vmax.f32 %v273, %v274
        %v276 = vrot.slane %v275, 1
        %v277 = vmax.f32 %v275, %v276
        %v278 = vsel %vm238, %v268, -inf
        %v279 = vrot.slane %v278, 4
        %v280 = vmax.f32 %v278, %v279
        %v281 = vrot.slane %v280, 2
        %v282 = vmax.f32 %v280, %v281
        %v283 = vrot.slane %v282, 1
        %v284 = vmax.f32 %v282, %v283
        %v287 = vrot.slane %v284, 7
        %v288 = vsel %vm256, %v277, %v287
        %v290 = vmax.f32 %v265, %v288
        %291 = vst.msk [vmem:[#allocation3] sm:$0x3] %vm263, %v290
        // Predicated region
        $region45: #{tpu_custom_call.1} parent=31 // pred_check
          %p292 = pneg %p220
        $region46: #{tpu_custom_call.1} parent=31 // pred_check_branch
          %294 = sbr.rel (%p292) target = $region48
        $region47: #{tpu_custom_call.1} parent=31 // pred_region
          %v295 = vld [vmem:[#allocation2] sm:$0x3]
          %v296 = vmul.f32 %v295, 0.25
          %v297 = vld [vmem:[#allocation3] sm:$0x3]
          %vm298 = vcmask 1041408
          %vm299 = vcmask 1043458
          %vm300 = vmor %vm299, %vm298
          %vm301 = vcmask 832516
          %vm302 = vmor %vm301, %vm300
          %303 = vst.msk [vmem:[#allocation4] sm:$0x3f] %vm302, 0.0
          %305 = vrot.lane.b32.xlu0 %v296, 51
          %v306 = vpop.permute.xlu0 %305
          %v307 = vrot.slane %v306, 7
          %vm308 = vcmask 416768
          %v309 = vsel %vm308, %v307, %v306
          %vm311 = vcmp.ge.s32.totalorder %v260, 51
          %vm312 = vcmp.lt.s32.totalorder %v260, 307
          %vm313 = vmand %vm311, %vm312
          %314 = vst.msk [vmem:[#allocation4] ss:$2 sm:$0x7] %vm313, %v309
          %316 = vrot.lane.b32.xlu0 %v297, 51
          %v317 = vpop.permute.xlu0 %316
          %v318 = vrot.slane %v317, 7
          %v319 = vsel %vm308, %v318, %v317
          %s321 = scalar_lea.vmem [#allocation4], 1
          %322 = vst.msk [vmem:[%s321] ss:$2 sm:$0x7] %vm313, %v319
          %s323 = sld [smem:[#allocation10]]
          %s324 = sld [smem:[#allocation10 + $0x1]]
          %s325 = sld [smem:[#allocation10 + $0x2]]
          %s326 = sld [smem:[#allocation10 + $0x3]]
          %s327 = sld [smem:[#allocation10 + $0x4]]
          %s328 = sld [smem:[#allocation10 + $0x5]]
          %s329 = sld [smem:[#allocation10 + $0x6]]
          %s330 = sld [smem:[#allocation10 + $0x7]]
          %s331 = sld [smem:[#allocation10 + $0x8]]
          %s332 = sld [smem:[#allocation10 + $0x9]]
          %s333 = sld [smem:[#allocation10 + $0xa]]
          %s334 = sld [smem:[#allocation10 + $0xb]]
          %s335 = sld [smem:[#allocation10 + $0xc]]
          %s336 = sld [smem:[#allocation10 + $0xd]]
          %s337 = sld [smem:[#allocation10 + $0xe]]
          %s338 = sld [smem:[#allocation10 + $0xf]]
          %s339 = sld [smem:[#allocation10 + $0x10]]
          %s340 = sld [smem:[#allocation10 + $0x11]]
          %s341 = sld [smem:[#allocation10 + $0x12]]
          %s342 = sld [smem:[#allocation10 + $0x13]]
          %s343 = sld [smem:[#allocation10 + $0x14]]
          %s344 = sld [smem:[#allocation10 + $0x15]]
          %s345 = sld [smem:[#allocation10 + $0x16]]
          %s346 = sld [smem:[#allocation10 + $0x17]]
          %s347 = sld [smem:[#allocation10 + $0x18]]
          %s348 = sld [smem:[#allocation10 + $0x19]]
          %s349 = sld [smem:[#allocation10 + $0x1a]]
          %s350 = sld [smem:[#allocation10 + $0x1b]]
          %s351 = sld [smem:[#allocation10 + $0x1c]]
          %s352 = sld [smem:[#allocation10 + $0x1d]]
          %s353 = sld [smem:[#allocation10 + $0x1e]]
          %s354 = sld [smem:[#allocation10 + $0x1f]]
          %s355 = sld [smem:[#allocation10 + $0x20]]
          %s356 = sld [smem:[#allocation10 + $0x21]]
          %s357 = sld [smem:[#allocation10 + $0x22]]
          %s358 = sld [smem:[#allocation10 + $0x23]]
          %s359 = sld [smem:[#allocation10 + $0x24]]
          %s360 = sld [smem:[#allocation10 + $0x25]]
          %s361 = sld [smem:[#allocation10 + $0x26]]
          %s362 = sld [smem:[#allocation10 + $0x27]]
          %s363 = sld [smem:[#allocation10 + $0x28]]
          %s364 = sld [smem:[#allocation10 + $0x29]]
          %s365 = sld [smem:[#allocation10 + $0x2a]]
          %s366 = sld [smem:[#allocation10 + $0x2b]]
          %s367 = sld [smem:[#allocation10 + $0x2c]]
          %s368 = sld [smem:[#allocation10 + $0x2d]]
          %s369 = sld [smem:[#allocation10 + $0x2e]]
          %s370 = sld [smem:[#allocation10 + $0x2f]]
          %s371 = sld [smem:[#allocation10 + $0x30]]
          %s372 = sld [smem:[#allocation10 + $0x31]]
          %s373 = sld [smem:[#allocation10 + $0x32]]
          %s374 = sld [smem:[#allocation10 + $0x33]]
          %s375 = sld [smem:[#allocation10 + $0x34]]
          %s376 = sld [smem:[#allocation10 + $0x35]]
          %s377 = sld [smem:[#allocation10 + $0x36]]
          %s378 = sld [smem:[#allocation10 + $0x37]]
          %s379 = sld [smem:[#allocation10 + $0x38]]
          %s380 = sld [smem:[#allocation10 + $0x39]]
          %s381 = sld [smem:[#allocation10 + $0x3a]]
          %s382 = sld [smem:[#allocation10 + $0x3b]]
          %s383 = sld [smem:[#allocation10 + $0x3c]]
          %s384 = sld [smem:[#allocation10 + $0x3d]]
          %s385 = sld [smem:[#allocation10 + $0x3e]]
          %s386 = sld [smem:[#allocation10 + $0x3f]]
          %s387 = sld [smem:[#allocation10 + $0x40]]
          %s388 = sld [smem:[#allocation10 + $0x41]]
          %s389 = sld [smem:[#allocation10 + $0x42]]
          %s390 = sld [smem:[#allocation10 + $0x43]]
          %s391 = sld [smem:[#allocation10 + $0x44]]
          %s392 = sld [smem:[#allocation10 + $0x45]]
          %s393 = sld [smem:[#allocation10 + $0x46]]
          %s394 = sld [smem:[#allocation10 + $0x47]]
          %s395 = sld [smem:[#allocation10 + $0x48]]
          %s396 = sld [smem:[#allocation10 + $0x49]]
          %s397 = sld [smem:[#allocation10 + $0x4a]]
          %s398 = sld [smem:[#allocation10 + $0x4b]]
          %s399 = sld [smem:[#allocation10 + $0x4c]]
          %s400 = sld [smem:[#allocation10 + $0x4d]]
          %s401 = sld [smem:[#allocation10 + $0x4e]]
          %s402 = sld [smem:[#allocation10 + $0x4f]]
          %s403 = sld [smem:[#allocation10 + $0x50]]
          %s404 = sld [smem:[#allocation10 + $0x51]]
          %s405 = sld [smem:[#allocation10 + $0x52]]
          %s406 = sld [smem:[#allocation10 + $0x53]]
          %s407 = sld [smem:[#allocation10 + $0x54]]
          %s408 = sld [smem:[#allocation10 + $0x55]]
          %s409 = sld [smem:[#allocation10 + $0x56]]
          %s410 = sld [smem:[#allocation10 + $0x57]]
          %s411 = sld [smem:[#allocation10 + $0x58]]
          %s412 = sld [smem:[#allocation10 + $0x59]]
          %s413 = sld [smem:[#allocation10 + $0x5a]]
          %s414 = sld [smem:[#allocation10 + $0x5b]]
          %s415 = sld [smem:[#allocation10 + $0x5c]]
          %s416 = sld [smem:[#allocation10 + $0x5d]]
          %s417 = sld [smem:[#allocation10 + $0x5e]]
          %s418 = sld [smem:[#allocation10 + $0x5f]]
          %s419 = sld [smem:[#allocation10 + $0x60]]
          %s420 = sld [smem:[#allocation10 + $0x61]]
          %s421 = sld [smem:[#allocation5]]
          %v422 = vlaneseq
          %v423 = vand.u32 %v422, 127
          %v424 = vadd.s32 %v423, 128
          %vm425 = vcmp.lt.s32.totalorder %v423, 0
          %v426 = vsub.s32 0, %v423
          %v427 = vsel %vm425, %v426, %v423
          %v428 = vshrl.u32 %v427, 4
          %v429 = vand.u32 %v427, 15
          %v430 = vsub.s32 0, %v429
          %v431 = vsel %vm425, %v430, %v429
          %vm432 = vcmp.lt.s32.totalorder %v424, 0
          %v433 = vsub.s32 0, %v424
          %v434 = vsel %vm432, %v433, %v424
          %v435 = vshrl.u32 %v434, 4
          %v436 = vand.u32 %v434, 15
          %v437 = vsub.s32 0, %v436
          %v438 = vsel %vm432, %v437, %v436
          %vm439 = vcmp.ne.s32.totalorder %v431, 0
          %vm440 = vcmp.ne.s32.totalorder %v438, 0
          %vm441 = vcmp.lt.s32.totalorder %v431, 0
          %vm442 = vcmp.lt.s32.totalorder %v438, 0
          %vm443 = vmand %vm441, %vm439
          %vm444 = vmand %vm442, %vm440
          %v445 = vadd.s32 %v431, 16
          %v446 = vadd.s32 %v438, 16
          %v447 = vsel %vm443, %v445, %v431
          %v448 = vsel %vm444, %v446, %v438
          %v449 = vstv %s421
          %v450 = vld [vmem:[#allocation4] ss:$2 sm:$0x3]
          %v451 = vstv %s323
          %v452 = vmul.f32 %v451, %v450
          %v453 = vadd.f32 %v452, 0.0
          %v454 = vld [vmem:[%s321] ss:$2 sm:$0x3]
          %v455 = vstv %s372
          %v456 = vmul.f32 %v455, %v454
          %v457 = vadd.f32 %v453, %v456
          %v458 = vld [vmem:[#allocation4] ss:$2 sm:$0x7]
          %v459 = vstv %s330
          %v460 = vmul.f32 %v459, %v458
          %462 = vrot.lane.b32.xlu0 %v460, 112
          %v463 = vpop.permute.xlu0 %462
          %v464 = vrot.slane %v463, 1
          %vm465 = vcmask 916480
          %v466 = vsel %vm465, %v463, %v464
          %v468 = vadd.f32 %v457, %v466
          %v469 = vld [vmem:[%s321] ss:$2 sm:$0x7]
          %v470 = vstv %s379
          %v471 = vmul.f32 %v470, %v469
          %473 = vrot.lane.b32.xlu0 %v471, 112
          %v474 = vpop.permute.xlu0 %473
          %v475 = vrot.slane %v474, 1
          %v476 = vsel %vm465, %v474, %v475
          %v478 = vadd.f32 %v468, %v476
          %v479 = vstv %s337
          %v480 = vmul.f32 %v479, %v458
          %482 = vrot.lane.b32.xlu0 %v480, 96
          %v483 = vpop.permute.xlu0 %482
          %v484 = vrot.slane %v483, 1
          %vm485 = vcmask 785408
          %v486 = vsel %vm485, %v483, %v484
          %v488 = vadd.f32 %v478, %v486
          %v489 = vstv %s386
          %v490 = vmul.f32 %v489, %v469
          %492 = vrot.lane.b32.xlu0 %v490, 96
          %v493 = vpop.permute.xlu0 %492
          %v494 = vrot.slane %v493, 1
          %v495 = vsel %vm485, %v493, %v494
          %v497 = vadd.f32 %v488, %v495
          %v498 = vstv %s344
          %v499 = vmul.f32 %v498, %v458
          %501 = vrot.lane.b32.xlu0 %v499, 80
          %v502 = vpop.permute.xlu0 %501
          %v503 = vrot.slane %v502, 1
          %vm504 = vcmask 654336
          %v505 = vsel %vm504, %v502, %v503
          %v507 = vadd.f32 %v497, %v505
          %v508 = vstv %s393
          %v509 = vmul.f32 %v508, %v469
          %511 = vrot.lane.b32.xlu0 %v509, 80
          %v512 = vpop.permute.xlu0 %511
          %v513 = vrot.slane %v512, 1
          %v514 = vsel %vm504, %v512, %v513
          %v516 = vadd.f32 %v507, %v514
          %v517 = vstv %s351
          %v518 = vmul.f32 %v517, %v458
          %520 = vrot.lane.b32.xlu0 %v518, 64
          %v521 = vpop.permute.xlu0 %520
          %v522 = vrot.slane %v521, 1
          %vm523 = vcmask 523264
          %v524 = vsel %vm523, %v521, %v522
          %v526 = vadd.f32 %v516, %v524
          %v527 = vstv %s400
          %v528 = vmul.f32 %v527, %v469
          %530 = vrot.lane.b32.xlu0 %v528, 64
          %v531 = vpop.permute.xlu0 %530
          %v532 = vrot.slane %v531, 1
          %v533 = vsel %vm523, %v531, %v532
          %v535 = vadd.f32 %v526, %v533
          %v536 = vstv %s358
          %v537 = vmul.f32 %v536, %v458
          %539 = vrot.lane.b32.xlu0 %v537, 48
          %v540 = vpop.permute.xlu0 %539
          %v541 = vrot.slane %v540, 1
          %vm542 = vcmask 392192
          %v543 = vsel %vm542, %v540, %v541
          %v545 = vadd.f32 %v535, %v543
          %v546 = vstv %s407
          %v547 = vmul.f32 %v546, %v469
          %549 = vrot.lane.b32.xlu0 %v547, 48
          %v550 = vpop.permute.xlu0 %549
          %v551 = vrot.slane %v550, 1
          %v552 = vsel %vm542, %v550, %v551
          %v554 = vadd.f32 %v545, %v552
          %v555 = vstv %s365
          %v556 = vmul.f32 %v555, %v458
          %558 = vrot.lane.b32.xlu0 %v556, 32
          %v559 = vpop.permute.xlu0 %558
          %v560 = vrot.slane %v559, 1
          %vm561 = vcmask 261120
          %v562 = vsel %vm561, %v559, %v560
          %v564 = vadd.f32 %v554, %v562
          %v565 = vstv %s414
          %v566 = vmul.f32 %v565, %v469
          %568 = vrot.lane.b32.xlu0 %v566, 32
          %v569 = vpop.permute.xlu0 %568
          %v570 = vrot.slane %v569, 1
          %v571 = vsel %vm561, %v569, %v570
          %v573 = vadd.f32 %v564, %v571
          %vm574 = vcmp.ge.s32.totalorder %v447, 3
          %vm575 = vcmp.ge.s32.totalorder %v448, 3
          %vm576 = vcmp.lt.s32.totalorder %v447, 19
          %vm577 = vcmp.lt.s32.totalorder %v448, 19
          %vm578 = vmand %vm574, %vm576
          %vm579 = vmand %vm575, %vm577
          %v581 = vperm.slane %v573, 0
          %v582 = vperm.slane %v573, 1
          %v585 = vsel %vm578, %v581, 0.0
          %v586 = vsel %vm579, %v582, 0.0
          %v587 = vadd.f32 %v449, %v585
          %v588 = vadd.f32 %v449, %v586
          %v589 = vstv %s324
          %v590 = vmul.f32 %v589, %v458
          %v591 = vadd.f32 %v590, 0.0
          %v592 = vstv %s373
          %v593 = vmul.f32 %v592, %v469
          %v594 = vadd.f32 %v591, %v593
          %v595 = vstv %s331
          %v596 = vmul.f32 %v595, %v458
          %598 = vrot.lane.b32.xlu0 %v596, 112
          %v599 = vpop.permute.xlu0 %598
          %v600 = vrot.slane %v599, 1
          %v601 = vsel %vm465, %v599, %v600
          %v603 = vadd.f32 %v594, %v601
          %v604 = vstv %s380
          %v605 = vmul.f32 %v604, %v469
          %607 = vrot.lane.b32.xlu0 %v605, 112
          %v608 = vpop.permute.xlu0 %607
          %v609 = vrot.slane %v608, 1
          %v610 = vsel %vm465, %v608, %v609
          %v612 = vadd.f32 %v603, %v610
          %v613 = vstv %s338
          %v614 = vmul.f32 %v613, %v458
          %616 = vrot.lane.b32.xlu0 %v614, 96
          %v617 = vpop.permute.xlu0 %616
          %v618 = vrot.slane %v617, 1
          %v619 = vsel %vm485, %v617, %v618
          %v621 = vadd.f32 %v612, %v619
          %v622 = vstv %s387
          %v623 = vmul.f32 %v622, %v469
          %625 = vrot.lane.b32.xlu0 %v623, 96
          %v626 = vpop.permute.xlu0 %625
          %v627 = vrot.slane %v626, 1
          %v628 = vsel %vm485, %v626, %v627
          %v630 = vadd.f32 %v621, %v628
          %v631 = vstv %s345
          %v632 = vmul.f32 %v631, %v458
          %634 = vrot.lane.b32.xlu0 %v632, 80
          %v635 = vpop.permute.xlu0 %634
          %v636 = vrot.slane %v635, 1
          %v637 = vsel %vm504, %v635, %v636
          %v639 = vadd.f32 %v630, %v637
          %v640 = vstv %s394
          %v641 = vmul.f32 %v640, %v469
          %643 = vrot.lane.b32.xlu0 %v641, 80
          %v644 = vpop.permute.xlu0 %643
          %v645 = vrot.slane %v644, 1
          %v646 = vsel %vm504, %v644, %v645
          %v648 = vadd.f32 %v639, %v646
          %v649 = vstv %s352
          %v650 = vmul.f32 %v649, %v458
          %652 = vrot.lane.b32.xlu0 %v650, 64
          %v653 = vpop.permute.xlu0 %652
          %v654 = vrot.slane %v653, 1
          %v655 = vsel %vm523, %v653, %v654
          %v657 = vadd.f32 %v648, %v655
          %v658 = vstv %s401
          %v659 = vmul.f32 %v658, %v469
          %661 = vrot.lane.b32.xlu0 %v659, 64
          %v662 = vpop.permute.xlu0 %661
          %v663 = vrot.slane %v662, 1
          %v664 = vsel %vm523, %v662, %v663
          %v666 = vadd.f32 %v657, %v664
          %v667 = vstv %s359
          %v668 = vmul.f32 %v667, %v458
          %670 = vrot.lane.b32.xlu0 %v668, 48
          %v671 = vpop.permute.xlu0 %670
          %v672 = vrot.slane %v671, 1
          %v673 = vsel %vm542, %v671, %v672
          %v675 = vadd.f32 %v666, %v673
          %v676 = vstv %s408
          %v677 = vmul.f32 %v676, %v469
          %679 = vrot.lane.b32.xlu0 %v677, 48
          %v680 = vpop.permute.xlu0 %679
          %v681 = vrot.slane %v680, 1
          %v682 = vsel %vm542, %v680, %v681
          %v684 = vadd.f32 %v675, %v682
          %v685 = vstv %s366
          %v686 = vmul.f32 %v685, %v458
          %688 = vrot.lane.b32.xlu0 %v686, 32
          %v689 = vpop.permute.xlu0 %688
          %v690 = vrot.slane %v689, 1
          %v691 = vsel %vm561, %v689, %v690
          %v693 = vadd.f32 %v684, %v691
          %v694 = vstv %s415
          %v695 = vmul.f32 %v694, %v469
          %697 = vrot.lane.b32.xlu0 %v695, 32
          %v698 = vpop.permute.xlu0 %697
          %v699 = vrot.slane %v698, 1
          %v700 = vsel %vm561, %v698, %v699
          %v702 = vadd.f32 %v693, %v700
          %vm703 = vcmp.ge.s32.totalorder %v447, 2
          %vm704 = vcmp.ge.s32.totalorder %v448, 2
          %vm705 = vcmp.lt.s32.totalorder %v447, 18
          %vm706 = vcmp.lt.s32.totalorder %v448, 18
          %vm707 = vmand %vm703, %vm705
          %vm708 = vmand %vm704, %vm706
          %v710 = vperm.slane %v702, 0
          %v711 = vperm.slane %v702, 1
          %v712 = vperm.slane %v702, 2
          %713 = vrot.lane.b32.xlu0 %v710, 127
          %v714 = vpop.permute.xlu0 %713
          %715 = vrot.lane.b32.xlu0 %v711, 127
          %v716 = vpop.permute.xlu0 %715
          %717 = vrot.lane.b32.xlu0 %v712, 127
          %v718 = vpop.permute.xlu0 %717
          %vm719 = vcmask 1039360
          %v720 = vsel %vm719, %v714, %v716
          %v721 = vsel %vm719, %v716, %v718
          %v724 = vsel %vm707, %v720, 0.0
          %v725 = vsel %vm708, %v721, 0.0
          %v726 = vadd.f32 %v587, %v724
          %v727 = vadd.f32 %v588, %v725
          %v728 = vstv %s325
          %v729 = vmul.f32 %v728, %v458
          %v730 = vadd.f32 %v729, 0.0
          %v731 = vstv %s374
          %v732 = vmul.f32 %v731, %v469
          %v733 = vadd.f32 %v730, %v732
          %v734 = vstv %s332
          %v735 = vmul.f32 %v734, %v458
          %737 = vrot.lane.b32.xlu0 %v735, 112
          %v738 = vpop.permute.xlu0 %737
          %v739 = vrot.slane %v738, 1
          %v740 = vsel %vm465, %v738, %v739
          %v742 = vadd.f32 %v733, %v740
          %v743 = vstv %s381
          %v744 = vmul.f32 %v743, %v469
          %746 = vrot.lane.b32.xlu0 %v744, 112
          %v747 = vpop.permute.xlu0 %746
          %v748 = vrot.slane %v747, 1
          %v749 = vsel %vm465, %v747, %v748
          %v751 = vadd.f32 %v742, %v749
          %v752 = vstv %s339
          %v753 = vmul.f32 %v752, %v458
          %755 = vrot.lane.b32.xlu0 %v753, 96
          %v756 = vpop.permute.xlu0 %755
          %v757 = vrot.slane %v756, 1
          %v758 = vsel %vm485, %v756, %v757
          %v760 = vadd.f32 %v751, %v758
          %v761 = vstv %s388
          %v762 = vmul.f32 %v761, %v469
          %764 = vrot.lane.b32.xlu0 %v762, 96
          %v765 = vpop.permute.xlu0 %764
          %v766 = vrot.slane %v765, 1
          %v767 = vsel %vm485, %v765, %v766
          %v769 = vadd.f32 %v760, %v767
          %v770 = vstv %s346
          %v771 = vmul.f32 %v770, %v458
          %773 = vrot.lane.b32.xlu0 %v771, 80
          %v774 = vpop.permute.xlu0 %773
          %v775 = vrot.slane %v774, 1
          %v776 = vsel %vm504, %v774, %v775
          %v778 = vadd.f32 %v769, %v776
          %v779 = vstv %s395
          %v780 = vmul.f32 %v779, %v469
          %782 = vrot.lane.b32.xlu0 %v780, 80
          %v783 = vpop.permute.xlu0 %782
          %v784 = vrot.slane %v783, 1
          %v785 = vsel %vm504, %v783, %v784
          %v787 = vadd.f32 %v778, %v785
          %v788 = vstv %s353
          %v789 = vmul.f32 %v788, %v458
          %791 = vrot.lane.b32.xlu0 %v789, 64
          %v792 = vpop.permute.xlu0 %791
          %v793 = vrot.slane %v792, 1
          %v794 = vsel %vm523, %v792, %v793
          %v796 = vadd.f32 %v787, %v794
          %v797 = vstv %s402
          %v798 = vmul.f32 %v797, %v469
          %800 = vrot.lane.b32.xlu0 %v798, 64
          %v801 = vpop.permute.xlu0 %800
          %v802 = vrot.slane %v801, 1
          %v803 = vsel %vm523, %v801, %v802
          %v805 = vadd.f32 %v796, %v803
          %v806 = vstv %s360
          %v807 = vmul.f32 %v806, %v458
          %809 = vrot.lane.b32.xlu0 %v807, 48
          %v810 = vpop.permute.xlu0 %809
          %v811 = vrot.slane %v810, 1
          %v812 = vsel %vm542, %v810, %v811
          %v814 = vadd.f32 %v805, %v812
          %v815 = vstv %s409
          %v816 = vmul.f32 %v815, %v469
          %818 = vrot.lane.b32.xlu0 %v816, 48
          %v819 = vpop.permute.xlu0 %818
          %v820 = vrot.slane %v819, 1
          %v821 = vsel %vm542, %v819, %v820
          %v823 = vadd.f32 %v814, %v821
          %v824 = vstv %s367
          %v825 = vmul.f32 %v824, %v458
          %827 = vrot.lane.b32.xlu0 %v825, 32
          %v828 = vpop.permute.xlu0 %827
          %v829 = vrot.slane %v828, 1
          %v830 = vsel %vm561, %v828, %v829
          %v832 = vadd.f32 %v823, %v830
          %v833 = vstv %s416
          %v834 = vmul.f32 %v833, %v469
          %836 = vrot.lane.b32.xlu0 %v834, 32
          %v837 = vpop.permute.xlu0 %836
          %v838 = vrot.slane %v837, 1
          %v839 = vsel %vm561, %v837, %v838
          %v841 = vadd.f32 %v832, %v839
          %vm842 = vcmp.ge.s32.totalorder %v447, 1
          %vm843 = vcmp.ge.s32.totalorder %v448, 1
          %vm844 = vcmp.lt.s32.totalorder %v447, 17
          %vm845 = vcmp.lt.s32.totalorder %v448, 17
          %vm846 = vmand %vm842, %vm844
          %vm847 = vmand %vm843, %vm845
          %v849 = vperm.slane %v841, 0
          %v850 = vperm.slane %v841, 1
          %v851 = vperm.slane %v841, 2
          %852 = vrot.lane.b32.xlu0 %v849, 126
          %v853 = vpop.permute.xlu0 %852
          %854 = vrot.lane.b32.xlu0 %v850, 126
          %v855 = vpop.permute.xlu0 %854
          %856 = vrot.lane.b32.xlu0 %v851, 126
          %v857 = vpop.permute.xlu0 %856
          %vm858 = vcmask 1031168
          %v859 = vsel %vm858, %v853, %v855
          %v860 = vsel %vm858, %v855, %v857
          %v863 = vsel %vm846, %v859, 0.0
          %v864 = vsel %vm847, %v860, 0.0
          %v865 = vadd.f32 %v726, %v863
          %v866 = vadd.f32 %v727, %v864
          %v867 = vstv %s326
          %v868 = vmul.f32 %v867, %v458
          %v869 = vadd.f32 %v868, 0.0
          %v870 = vstv %s375
          %v871 = vmul.f32 %v870, %v469
          %v872 = vadd.f32 %v869, %v871
          %v873 = vstv %s333
          %v874 = vmul.f32 %v873, %v458
          %876 = vrot.lane.b32.xlu0 %v874, 112
          %v877 = vpop.permute.xlu0 %876
          %v878 = vrot.slane %v877, 1
          %v879 = vsel %vm465, %v877, %v878
          %v881 = vadd.f32 %v872, %v879
          %v882 = vstv %s382
          %v883 = vmul.f32 %v882, %v469
          %885 = vrot.lane.b32.xlu0 %v883, 112
          %v886 = vpop.permute.xlu0 %885
          %v887 = vrot.slane %v886, 1
          %v888 = vsel %vm465, %v886, %v887
          %v890 = vadd.f32 %v881, %v888
          %v891 = vstv %s340
          %v892 = vmul.f32 %v891, %v458
          %894 = vrot.lane.b32.xlu0 %v892, 96
          %v895 = vpop.permute.xlu0 %894
          %v896 = vrot.slane %v895, 1
          %v897 = vsel %vm485, %v895, %v896
          %v899 = vadd.f32 %v890, %v897
          %v900 = vstv %s389
          %v901 = vmul.f32 %v900, %v469
          %903 = vrot.lane.b32.xlu0 %v901, 96
          %v904 = vpop.permute.xlu0 %903
          %v905 = vrot.slane %v904, 1
          %v906 = vsel %vm485, %v904, %v905
          %v908 = vadd.f32 %v899, %v906
          %v909 = vstv %s347
          %v910 = vmul.f32 %v909, %v458
          %912 = vrot.lane.b32.xlu0 %v910, 80
          %v913 = vpop.permute.xlu0 %912
          %v914 = vrot.slane %v913, 1
          %v915 = vsel %vm504, %v913, %v914
          %v917 = vadd.f32 %v908, %v915
          %v918 = vstv %s396
          %v919 = vmul.f32 %v918, %v469
          %921 = vrot.lane.b32.xlu0 %v919, 80
          %v922 = vpop.permute.xlu0 %921
          %v923 = vrot.slane %v922, 1
          %v924 = vsel %vm504, %v922, %v923
          %v926 = vadd.f32 %v917, %v924
          %v927 = vstv %s354
          %v928 = vmul.f32 %v927, %v458
          %930 = vrot.lane.b32.xlu0 %v928, 64
          %v931 = vpop.permute.xlu0 %930
          %v932 = vrot.slane %v931, 1
          %v933 = vsel %vm523, %v931, %v932
          %v935 = vadd.f32 %v926, %v933
          %v936 = vstv %s403
          %v937 = vmul.f32 %v936, %v469
          %939 = vrot.lane.b32.xlu0 %v937, 64
          %v940 = vpop.permute.xlu0 %939
          %v941 = vrot.slane %v940, 1
          %v942 = vsel %vm523, %v940, %v941
          %v944 = vadd.f32 %v935, %v942
          %v945 = vstv %s361
          %v946 = vmul.f32 %v945, %v458
          %948 = vrot.lane.b32.xlu0 %v946, 48
          %v949 = vpop.permute.xlu0 %948
          %v950 = vrot.slane %v949, 1
          %v951 = vsel %vm542, %v949, %v950
          %v953 = vadd.f32 %v944, %v951
          %v954 = vstv %s410
          %v955 = vmul.f32 %v954, %v469
          %957 = vrot.lane.b32.xlu0 %v955, 48
          %v958 = vpop.permute.xlu0 %957
          %v959 = vrot.slane %v958, 1
          %v960 = vsel %vm542, %v958, %v959
          %v962 = vadd.f32 %v953, %v960
          %v963 = vstv %s368
          %v964 = vmul.f32 %v963, %v458
          %966 = vrot.lane.b32.xlu0 %v964, 32
          %v967 = vpop.permute.xlu0 %966
          %v968 = vrot.slane %v967, 1
          %v969 = vsel %vm561, %v967, %v968
          %v971 = vadd.f32 %v962, %v969
          %v972 = vstv %s417
          %v973 = vmul.f32 %v972, %v469
          %975 = vrot.lane.b32.xlu0 %v973, 32
          %v976 = vpop.permute.xlu0 %975
          %v977 = vrot.slane %v976, 1
          %v978 = vsel %vm561, %v976, %v977
          %v980 = vadd.f32 %v971, %v978
          %vm981 = vcmp.ge.s32.totalorder %v447, 0
          %vm982 = vcmp.ge.s32.totalorder %v448, 0
          %vm983 = vcmp.lt.s32.totalorder %v447, 16
          %vm984 = vcmp.lt.s32.totalorder %v448, 16
          %vm985 = vmand %vm981, %vm983
          %vm986 = vmand %vm982, %vm984
          %v988 = vperm.slane %v980, 0
          %v989 = vperm.slane %v980, 1
          %v990 = vperm.slane %v980, 2
          %991 = vrot.lane.b32.xlu0 %v988, 125
          %v992 = vpop.permute.xlu0 %991
          %993 = vrot.lane.b32.xlu0 %v989, 125
          %v994 = vpop.permute.xlu0 %993
          %995 = vrot.lane.b32.xlu0 %v990, 125
          %v996 = vpop.permute.xlu0 %995
          %vm997 = vcmask 1022976
          %v998 = vsel %vm997, %v992, %v994
          %v999 = vsel %vm997, %v994, %v996
          %v1002 = vsel %vm985, %v998, 0.0
          %v1003 = vsel %vm986, %v999, 0.0
          %v1004 = vadd.f32 %v865, %v1002
          %v1005 = vadd.f32 %v866, %v1003
          %v1006 = vstv %s327
          %v1007 = vmul.f32 %v1006, %v458
          %v1008 = vadd.f32 %v1007, 0.0
          %v1009 = vstv %s376
          %v1010 = vmul.f32 %v1009, %v469
          %v1011 = vadd.f32 %v1008, %v1010
          %v1012 = vstv %s334
          %v1013 = vmul.f32 %v1012, %v458
          %1015 = vrot.lane.b32.xlu0 %v1013, 112
          %v1016 = vpop.permute.xlu0 %1015
          %v1017 = vrot.slane %v1016, 1
          %v1018 = vsel %vm465, %v1016, %v1017
          %v1020 = vadd.f32 %v1011, %v1018
          %v1021 = vstv %s383
          %v1022 = vmul.f32 %v1021, %v469
          %1024 = vrot.lane.b32.xlu0 %v1022, 112
          %v1025 = vpop.permute.xlu0 %1024
          %v1026 = vrot.slane %v1025, 1
          %v1027 = vsel %vm465, %v1025, %v1026
          %v1029 = vadd.f32 %v1020, %v1027
          %v1030 = vstv %s341
          %v1031 = vmul.f32 %v1030, %v458
          %1033 = vrot.lane.b32.xlu0 %v1031, 96
          %v1034 = vpop.permute.xlu0 %1033
          %v1035 = vrot.slane %v1034, 1
          %v1036 = vsel %vm485, %v1034, %v1035
          %v1038 = vadd.f32 %v1029, %v1036
          %v1039 = vstv %s390
          %v1040 = vmul.f32 %v1039, %v469
          %1042 = vrot.lane.b32.xlu0 %v1040, 96
          %v1043 = vpop.permute.xlu0 %1042
          %v1044 = vrot.slane %v1043, 1
          %v1045 = vsel %vm485, %v1043, %v1044
          %v1047 = vadd.f32 %v1038, %v1045
          %v1048 = vstv %s348
          %v1049 = vmul.f32 %v1048, %v458
          %1051 = vrot.lane.b32.xlu0 %v1049, 80
          %v1052 = vpop.permute.xlu0 %1051
          %v1053 = vrot.slane %v1052, 1
          %v1054 = vsel %vm504, %v1052, %v1053
          %v1056 = vadd.f32 %v1047, %v1054
          %v1057 = vstv %s397
          %v1058 = vmul.f32 %v1057, %v469
          %1060 = vrot.lane.b32.xlu0 %v1058, 80
          %v1061 = vpop.permute.xlu0 %1060
          %v1062 = vrot.slane %v1061, 1
          %v1063 = vsel %vm504, %v1061, %v1062
          %v1065 = vadd.f32 %v1056, %v1063
          %v1066 = vstv %s355
          %v1067 = vmul.f32 %v1066, %v458
          %1069 = vrot.lane.b32.xlu0 %v1067, 64
          %v1070 = vpop.permute.xlu0 %1069
          %v1071 = vrot.slane %v1070, 1
          %v1072 = vsel %vm523, %v1070, %v1071
          %v1074 = vadd.f32 %v1065, %v1072
          %v1075 = vstv %s404
          %v1076 = vmul.f32 %v1075, %v469
          %1078 = vrot.lane.b32.xlu0 %v1076, 64
          %v1079 = vpop.permute.xlu0 %1078
          %v1080 = vrot.slane %v1079, 1
          %v1081 = vsel %vm523, %v1079, %v1080
          %v1083 = vadd.f32 %v1074, %v1081
          %v1084 = vstv %s362
          %v1085 = vmul.f32 %v1084, %v458
          %1087 = vrot.lane.b32.xlu0 %v1085, 48
          %v1088 = vpop.permute.xlu0 %1087
          %v1089 = vrot.slane %v1088, 1
          %v1090 = vsel %vm542, %v1088, %v1089
          %v1092 = vadd.f32 %v1083, %v1090
          %v1093 = vstv %s411
          %v1094 = vmul.f32 %v1093, %v469
          %1096 = vrot.lane.b32.xlu0 %v1094, 48
          %v1097 = vpop.permute.xlu0 %1096
          %v1098 = vrot.slane %v1097, 1
          %v1099 = vsel %vm542, %v1097, %v1098
          %v1101 = vadd.f32 %v1092, %v1099
          %v1102 = vstv %s369
          %v1103 = vmul.f32 %v1102, %v458
          %1105 = vrot.lane.b32.xlu0 %v1103, 32
          %v1106 = vpop.permute.xlu0 %1105
          %v1107 = vrot.slane %v1106, 1
          %v1108 = vsel %vm561, %v1106, %v1107
          %v1110 = vadd.f32 %v1101, %v1108
          %v1111 = vstv %s418
          %v1112 = vmul.f32 %v1111, %v469
          %1114 = vrot.lane.b32.xlu0 %v1112, 32
          %v1115 = vpop.permute.xlu0 %1114
          %v1116 = vrot.slane %v1115, 1
          %v1117 = vsel %vm561, %v1115, %v1116
          %v1119 = vadd.f32 %v1110, %v1117
          %vm1120 = vcmp.ge.s32.totalorder %v447, 4294967295
          %vm1121 = vcmp.ge.s32.totalorder %v448, 4294967295
          %vm1122 = vcmp.lt.s32.totalorder %v447, 15
          %vm1123 = vcmp.lt.s32.totalorder %v448, 15
          %vm1124 = vmand %vm1120, %vm1122
          %vm1125 = vmand %vm1121, %vm1123
          %v1127 = vperm.slane %v1119, 0
          %v1128 = vperm.slane %v1119, 1
          %v1129 = vperm.slane %v1119, 2
          %1130 = vrot.lane.b32.xlu0 %v1127, 124
          %v1131 = vpop.permute.xlu0 %1130
          %1132 = vrot.lane.b32.xlu0 %v1128, 124
          %v1133 = vpop.permute.xlu0 %1132
          %1134 = vrot.lane.b32.xlu0 %v1129, 124
          %v1135 = vpop.permute.xlu0 %1134
          %vm1136 = vcmask 1014784
          %v1137 = vsel %vm1136, %v1131, %v1133
          %v1138 = vsel %vm1136, %v1133, %v1135
          %v1141 = vsel %vm1124, %v1137, 0.0
          %v1142 = vsel %vm1125, %v1138, 0.0
          %v1143 = vadd.f32 %v1004, %v1141
          %v1144 = vadd.f32 %v1005, %v1142
          %v1145 = vstv %s328
          %v1146 = vmul.f32 %v1145, %v458
          %v1147 = vadd.f32 %v1146, 0.0
          %v1148 = vstv %s377
          %v1149 = vmul.f32 %v1148, %v469
          %v1150 = vadd.f32 %v1147, %v1149
          %v1151 = vstv %s335
          %v1152 = vmul.f32 %v1151, %v458
          %1154 = vrot.lane.b32.xlu0 %v1152, 112
          %v1155 = vpop.permute.xlu0 %1154
          %v1156 = vrot.slane %v1155, 1
          %v1157 = vsel %vm465, %v1155, %v1156
          %v1159 = vadd.f32 %v1150, %v1157
          %v1160 = vstv %s384
          %v1161 = vmul.f32 %v1160, %v469
          %1163 = vrot.lane.b32.xlu0 %v1161, 112
          %v1164 = vpop.permute.xlu0 %1163
          %v1165 = vrot.slane %v1164, 1
          %v1166 = vsel %vm465, %v1164, %v1165
          %v1168 = vadd.f32 %v1159, %v1166
          %v1169 = vstv %s342
          %v1170 = vmul.f32 %v1169, %v458
          %1172 = vrot.lane.b32.xlu0 %v1170, 96
          %v1173 = vpop.permute.xlu0 %1172
          %v1174 = vrot.slane %v1173, 1
          %v1175 = vsel %vm485, %v1173, %v1174
          %v1177 = vadd.f32 %v1168, %v1175
          %v1178 = vstv %s391
          %v1179 = vmul.f32 %v1178, %v469
          %1181 = vrot.lane.b32.xlu0 %v1179, 96
          %v1182 = vpop.permute.xlu0 %1181
          %v1183 = vrot.slane %v1182, 1
          %v1184 = vsel %vm485, %v1182, %v1183
          %v1186 = vadd.f32 %v1177, %v1184
          %v1187 = vstv %s349
          %v1188 = vmul.f32 %v1187, %v458
          %1190 = vrot.lane.b32.xlu0 %v1188, 80
          %v1191 = vpop.permute.xlu0 %1190
          %v1192 = vrot.slane %v1191, 1
          %v1193 = vsel %vm504, %v1191, %v1192
          %v1195 = vadd.f32 %v1186, %v1193
          %v1196 = vstv %s398
          %v1197 = vmul.f32 %v1196, %v469
          %1199 = vrot.lane.b32.xlu0 %v1197, 80
          %v1200 = vpop.permute.xlu0 %1199
          %v1201 = vrot.slane %v1200, 1
          %v1202 = vsel %vm504, %v1200, %v1201
          %v1204 = vadd.f32 %v1195, %v1202
          %v1205 = vstv %s356
          %v1206 = vmul.f32 %v1205, %v458
          %1208 = vrot.lane.b32.xlu0 %v1206, 64
          %v1209 = vpop.permute.xlu0 %1208
          %v1210 = vrot.slane %v1209, 1
          %v1211 = vsel %vm523, %v1209, %v1210
          %v1213 = vadd.f32 %v1204, %v1211
          %v1214 = vstv %s405
          %v1215 = vmul.f32 %v1214, %v469
          %1217 = vrot.lane.b32.xlu0 %v1215, 64
          %v1218 = vpop.permute.xlu0 %1217
          %v1219 = vrot.slane %v1218, 1
          %v1220 = vsel %vm523, %v1218, %v1219
          %v1222 = vadd.f32 %v1213, %v1220
          %v1223 = vstv %s363
          %v1224 = vmul.f32 %v1223, %v458
          %1226 = vrot.lane.b32.xlu0 %v1224, 48
          %v1227 = vpop.permute.xlu0 %1226
          %v1228 = vrot.slane %v1227, 1
          %v1229 = vsel %vm542, %v1227, %v1228
          %v1231 = vadd.f32 %v1222, %v1229
          %v1232 = vstv %s412
          %v1233 = vmul.f32 %v1232, %v469
          %1235 = vrot.lane.b32.xlu0 %v1233, 48
          %v1236 = vpop.permute.xlu0 %1235
          %v1237 = vrot.slane %v1236, 1
          %v1238 = vsel %vm542, %v1236, %v1237
          %v1240 = vadd.f32 %v1231, %v1238
          %v1241 = vstv %s370
          %v1242 = vmul.f32 %v1241, %v458
          %1244 = vrot.lane.b32.xlu0 %v1242, 32
          %v1245 = vpop.permute.xlu0 %1244
          %v1246 = vrot.slane %v1245, 1
          %v1247 = vsel %vm561, %v1245, %v1246
          %v1249 = vadd.f32 %v1240, %v1247
          %v1250 = vstv %s419
          %v1251 = vmul.f32 %v1250, %v469
          %1253 = vrot.lane.b32.xlu0 %v1251, 32
          %v1254 = vpop.permute.xlu0 %1253
          %v1255 = vrot.slane %v1254, 1
          %v1256 = vsel %vm561, %v1254, %v1255
          %v1258 = vadd.f32 %v1249, %v1256
          %vm1259 = vcmp.ge.s32.totalorder %v447, 4294967294
          %vm1260 = vcmp.ge.s32.totalorder %v448, 4294967294
          %vm1261 = vcmp.lt.s32.totalorder %v447, 14
          %vm1262 = vcmp.lt.s32.totalorder %v448, 14
          %vm1263 = vmand %vm1259, %vm1261
          %vm1264 = vmand %vm1260, %vm1262
          %v1266 = vperm.slane %v1258, 0
          %v1267 = vperm.slane %v1258, 1
          %v1268 = vperm.slane %v1258, 2
          %1269 = vrot.lane.b32.xlu0 %v1266, 123
          %v1270 = vpop.permute.xlu0 %1269
          %1271 = vrot.lane.b32.xlu0 %v1267, 123
          %v1272 = vpop.permute.xlu0 %1271
          %1273 = vrot.lane.b32.xlu0 %v1268, 123
          %v1274 = vpop.permute.xlu0 %1273
          %vm1275 = vcmask 1006592
          %v1276 = vsel %vm1275, %v1270, %v1272
          %v1277 = vsel %vm1275, %v1272, %v1274
          %v1280 = vsel %vm1263, %v1276, 0.0
          %v1281 = vsel %vm1264, %v1277, 0.0
          %v1282 = vadd.f32 %v1143, %v1280
          %v1283 = vadd.f32 %v1144, %v1281
          %v1284 = vstv %s329
          %v1285 = vmul.f32 %v1284, %v458
          %v1286 = vadd.f32 %v1285, 0.0
          %v1287 = vstv %s378
          %v1288 = vmul.f32 %v1287, %v469
          %v1289 = vadd.f32 %v1286, %v1288
          %v1290 = vstv %s336
          %v1291 = vmul.f32 %v1290, %v458
          %1293 = vrot.lane.b32.xlu0 %v1291, 112
          %v1294 = vpop.permute.xlu0 %1293
          %v1295 = vrot.slane %v1294, 1
          %v1296 = vsel %vm465, %v1294, %v1295
          %v1298 = vadd.f32 %v1289, %v1296
          %v1299 = vstv %s385
          %v1300 = vmul.f32 %v1299, %v469
          %1302 = vrot.lane.b32.xlu0 %v1300, 112
          %v1303 = vpop.permute.xlu0 %1302
          %v1304 = vrot.slane %v1303, 1
          %v1305 = vsel %vm465, %v1303, %v1304
          %v1307 = vadd.f32 %v1298, %v1305
          %v1308 = vstv %s343
          %v1309 = vmul.f32 %v1308, %v458
          %1311 = vrot.lane.b32.xlu0 %v1309, 96
          %v1312 = vpop.permute.xlu0 %1311
          %v1313 = vrot.slane %v1312, 1
          %v1314 = vsel %vm485, %v1312, %v1313
          %v1316 = vadd.f32 %v1307, %v1314
          %v1317 = vstv %s392
          %v1318 = vmul.f32 %v1317, %v469
          %1320 = vrot.lane.b32.xlu0 %v1318, 96
          %v1321 = vpop.permute.xlu0 %1320
          %v1322 = vrot.slane %v1321, 1
          %v1323 = vsel %vm485, %v1321, %v1322
          %v1325 = vadd.f32 %v1316, %v1323
          %v1326 = vstv %s350
          %v1327 = vmul.f32 %v1326, %v458
          %1329 = vrot.lane.b32.xlu0 %v1327, 80
          %v1330 = vpop.permute.xlu0 %1329
          %v1331 = vrot.slane %v1330, 1
          %v1332 = vsel %vm504, %v1330, %v1331
          %v1334 = vadd.f32 %v1325, %v1332
          %v1335 = vstv %s399
          %v1336 = vmul.f32 %v1335, %v469
          %1338 = vrot.lane.b32.xlu0 %v1336, 80
          %v1339 = vpop.permute.xlu0 %1338
          %v1340 = vrot.slane %v1339, 1
          %v1341 = vsel %vm504, %v1339, %v1340
          %v1343 = vadd.f32 %v1334, %v1341
          %v1344 = vstv %s357
          %v1345 = vmul.f32 %v1344, %v458
          %1347 = vrot.lane.b32.xlu0 %v1345, 64
          %v1348 = vpop.permute.xlu0 %1347
          %v1349 = vrot.slane %v1348, 1
          %v1350 = vsel %vm523, %v1348, %v1349
          %v1352 = vadd.f32 %v1343, %v1350
          %v1353 = vstv %s406
          %v1354 = vmul.f32 %v1353, %v469
          %1356 = vrot.lane.b32.xlu0 %v1354, 64
          %v1357 = vpop.permute.xlu0 %1356
          %v1358 = vrot.slane %v1357, 1
          %v1359 = vsel %vm523, %v1357, %v1358
          %v1361 = vadd.f32 %v1352, %v1359
          %v1362 = vstv %s364
          %v1363 = vmul.f32 %v1362, %v458
          %1365 = vrot.lane.b32.xlu0 %v1363, 48
          %v1366 = vpop.permute.xlu0 %1365
          %v1367 = vrot.slane %v1366, 1
          %v1368 = vsel %vm542, %v1366, %v1367
          %v1370 = vadd.f32 %v1361, %v1368
          %v1371 = vstv %s413
          %v1372 = vmul.f32 %v1371, %v469
          %1374 = vrot.lane.b32.xlu0 %v1372, 48
          %v1375 = vpop.permute.xlu0 %1374
          %v1376 = vrot.slane %v1375, 1
          %v1377 = vsel %vm542, %v1375, %v1376
          %v1379 = vadd.f32 %v1370, %v1377
          %v1380 = vstv %s371
          %v1381 = vmul.f32 %v1380, %v458
          %1383 = vrot.lane.b32.xlu0 %v1381, 32
          %v1384 = vpop.permute.xlu0 %1383
          %v1385 = vrot.slane %v1384, 1
          %v1386 = vsel %vm561, %v1384, %v1385
          %v1388 = vadd.f32 %v1379, %v1386
          %v1389 = vstv %s420
          %v1390 = vmul.f32 %v1389, %v469
          %1392 = vrot.lane.b32.xlu0 %v1390, 32
          %v1393 = vpop.permute.xlu0 %1392
          %v1394 = vrot.slane %v1393, 1
          %v1395 = vsel %vm561, %v1393, %v1394
          %v1397 = vadd.f32 %v1388, %v1395
          %vm1398 = vcmp.ge.s32.totalorder %v447, 4294967293
          %vm1399 = vcmp.ge.s32.totalorder %v448, 4294967293
          %vm1400 = vcmp.lt.s32.totalorder %v447, 13
          %vm1401 = vcmp.lt.s32.totalorder %v448, 13
          %vm1402 = vmand %vm1398, %vm1400
          %vm1403 = vmand %vm1399, %vm1401
          %v1405 = vperm.slane %v1397, 0
          %v1406 = vperm.slane %v1397, 1
          %v1407 = vperm.slane %v1397, 2
          %1408 = vrot.lane.b32.xlu0 %v1405, 122
          %v1409 = vpop.permute.xlu0 %1408
          %1410 = vrot.lane.b32.xlu0 %v1406, 122
          %v1411 = vpop.permute.xlu0 %1410
          %1412 = vrot.lane.b32.xlu0 %v1407, 122
          %v1413 = vpop.permute.xlu0 %1412
          %vm1414 = vcmask 998400
          %v1415 = vsel %vm1414, %v1409, %v1411
          %v1416 = vsel %vm1414, %v1411, %v1413
          %v1419 = vsel %vm1402, %v1415, 0.0
          %v1420 = vsel %vm1403, %v1416, 0.0
          %v1421 = vadd.f32 %v1282, %v1419
          %v1422 = vadd.f32 %v1283, %v1420
          %v1423 = vxor.u32 %v1421, 2147483648
          %v1424 = vxor.u32 %v1422, 2147483648
          %v1425 = vmul.f32 %v1423, 1.442695
          %v1426 = vpow.pop %v1425
          %v1427 = vmul.f32 %v1424, 1.442695
          %v1428 = vpow.pop %v1427
          %v1429 = vadd.f32 %v1426, 1.0
          %v1430 = vadd.f32 %v1428, 1.0
          %v1431 = vrcp.pop %v1429
          %v1432 = vmul.f32 %v1429, %v1431
          %v1433 = vsub.f32 1.0, %v1432
          %v1434 = vmul.f32 %v1431, %v1433
          %v1435 = vadd.f32 %v1431, %v1434
          %vm1436 = vweird.f32 %v1429
          %vm1437 = vweird.f32 %v1431
          %vm1438 = vmor %vm1436, %vm1437
          %v1439 = vsel %vm1438, %v1431, %v1435
          %v1440 = vand.u32 2147483647, %v1429
          %vm1441 = vcmp.eq.f32.partialorder %v1440, 8.507059e+37
          %v1442 = vand.u32 %v1429, 2147483648
          %v1443 = vor.u32 1.1754944e-38, %v1442
          %v1444 = vsel %vm1441, %v1443, %v1439
          %v1445 = vmul.f32 1.0, %v1444
          %v1446 = vrcp.pop %v1430
          %v1447 = vmul.f32 %v1430, %v1446
          %v1448 = vsub.f32 1.0, %v1447
          %v1449 = vmul.f32 %v1446, %v1448
          %v1450 = vadd.f32 %v1446, %v1449
          %vm1451 = vweird.f32 %v1430
          %vm1452 = vweird.f32 %v1446
          %vm1453 = vmor %vm1451, %vm1452
          %v1454 = vsel %vm1453, %v1446, %v1450
          %v1455 = vand.u32 2147483647, %v1430
          %vm1456 = vcmp.eq.f32.partialorder %v1455, 8.507059e+37
          %v1457 = vand.u32 %v1430, 2147483648
          %v1458 = vor.u32 1.1754944e-38, %v1457
          %v1459 = vsel %vm1456, %v1458, %v1454
          %v1460 = vmul.f32 1.0, %v1459
          %v1463 = vrot.slane %v1460, 7
          %v1464 = vsel %vm256, %v1445, %v1463
          %1466 = vst.msk [vmem:[%s219] sm:$0x3] %vm263, %v1464
        $region48: #{tpu_custom_call.1} parent=31 // pred_fallthru
          _
        %s1467 = sand.u32 %s112, 1
        %s1468 = scalar_lea.sflag [#allocation8], %s1467
        %s1469 = sand.u32 %s112, 1
        %s1470 = smul.addr %s1469, 2
        %s1471 = scalar_lea.vmem [#allocation11], %s1470
        // Predicated region
        $region49: #{tpu_custom_call.1} parent=31 // pred_check
          %p1472 = pneg %p122
        $region50: #{tpu_custom_call.1} parent=31 // pred_check_branch
          %1474 = sbr.rel (%p1472) target = $region52
        $region51: #{tpu_custom_call.1} parent=31 // pred_region
          %1476 = vsyncadd %s1468, 0
          %s1477 = smul.addr %s26, 2
          %s1478 = scalar_lea.hbm %s3, %s1477
          %s1480 = sshll.u32 %s1471, 4
          %s1481 = int_to_ptr.vmem [resolvable:$true] %s1480
          %s1482 = sshll.u32 %s1478, 4
          %s1483 = int_to_ptr.hbm [resolvable:$true] %s1482
          %1485 = dma.vmem_to_hbm [thread:$0]  %s1481, 32, %s1483, %s1468
        $region52: #{tpu_custom_call.1} parent=31 // pred_fallthru
          _
      $region32: #{tpu_custom_call.1} parent=5 // pred_fallthru
        _
      %p1486 = scmp.le.s32.totalorder 2, %s17
      // Predicated region
      $region53: #{tpu_custom_call.1} parent=5 // pred_check
        %p1487 = pneg %p1486
      $region54: #{tpu_custom_call.1} parent=5 // pred_check_branch
        %1489 = sbr.rel (%p1487) target = $region56
      $region55: #{tpu_custom_call.1} parent=5 // pred_region
        %s1490 = ssub.s32 %s17, 2
        // Predicated region
        $region57: #{tpu_custom_call.1} parent=55 // pred_check
          %p1491 = pneg %p128
        $region58: #{tpu_custom_call.1} parent=55 // pred_check_branch
          %1493 = sbr.rel (%p1491) target = $region60
        $region59: #{tpu_custom_call.1} parent=55 // pred_region
          %s1494 = sand.u32 %s113, 1
          %s1495 = scalar_lea.sflag [#allocation8], %s1494
          %s1496 = sand.u32 %s113, 1
          %s1497 = smul.addr %s1496, 2
          %s1498 = scalar_lea.vmem [#allocation11], %s1497
          %1500 = dma.done %s1495, 32
        $region60: #{tpu_custom_call.1} parent=55 // pred_fallthru
          _
      $region56: #{tpu_custom_call.1} parent=5 // pred_fallthru
        _
    $region6: #{tpu_custom_call.1} parent=1 // loop_footer
      %s21 = sadd.s32 1, %s17
    $region7: #{tpu_custom_call.1} parent=1 // loop_footer_branch
      %16 = sbr.rel target = $region3
    $region8: #{tpu_custom_call.1} parent=1 // loop_exit
      _
    %1501 = vsyncpa [#allocation7], 1
    %s1502 = scalar_lea.sflag [#allocation7], 1
    %1503 = vsyncpa %s1502, 1
    %1504 = vsyncpa [#allocation8], 1
    %s1505 = scalar_lea.sflag [#allocation8], 1
    %1506 = vsyncpa %s1505, 1
    %1507 = vsyncpa [#allocation9], 1
    %s1508 = scalar_lea.sflag [#allocation9], 1
    %1509 = vsyncpa %s1508, 1

</llo_original>
